<compile_context>
chip_gen: v7x
topology: tpu7x:2x2x1
jax: 0.10.0
libtpu: 0.0.40
codegen_flags: <defaults>
</compile_context>

<pallas_src>
import functools

import jax
import jax.numpy as jnp
from jax.experimental import pallas as pl
from jax.experimental.pallas import tpu as pltpu

LANE = 128
_VMEM_LIMIT = 32 * 1024 * 1024  # safe on v5e/v6e/v7x (64 MiB physical on v7x)


def _round_up(x, m):
    return (x + m - 1) // m * m


def _pad2(a, rows, cols):
    return jnp.pad(a, ((0, rows - a.shape[0]), (0, cols - a.shape[1])))


def _tiling(n):
    """Padded node count + row/contraction tile sizes."""
    n_pad = _round_up(n, 256)
    tm = 256                                   # >=2 row tiles for n_pad>=512 (v7x megacore)
    tk = 512 if n_pad % 512 == 0 else 256      # >=256 fills v6e/v7x MXU contraction
    return n_pad, tm, tk


# --------------------------------------------------------------------------
# Fused per-layer kernel:
#   acc += A[i,k] @ (x[k] @ W_l)          (bf16 MXU, f32 accumulate)
#   last k: out = acc * (1/deg) + x[i] @ W_r + b, then relu / masked log_softmax
# --------------------------------------------------------------------------
def sage_layer_kernel(a_ref, xk_ref, xi_ref, w_ref, b_ref, invdeg_ref, o_ref,
                      acc_ref, *, f_out_pad, n_valid_lanes, apply_relu,
                      apply_log_softmax):
    k = pl.program_id(1)

    @pl.when(k == 0)
    def _():
        acc_ref[...] = jnp.zeros_like(acc_ref)

    # Neighbor projection for this contraction slab (recomputed per row tile;
    # the kernel is HBM-bandwidth-bound so the redundant MXU work is free).
    h_k = jnp.dot(xk_ref[...], w_ref[:, :f_out_pad],
                  preferred_element_type=jnp.float32).astype(jnp.bfloat16)
    # Binary int8 adjacency -> bf16 (0/1 exact); 1/deg applied in the epilogue.
    a_bf = a_ref[...].astype(jnp.float32).astype(jnp.bfloat16)
    acc_ref[...] += jnp.dot(a_bf, h_k, preferred_element_type=jnp.float32)

    @pl.when(k == pl.num_programs(1) - 1)
    def _():
        skip = jnp.dot(xi_ref[...], w_ref[:, f_out_pad:],
                       preferred_element_type=jnp.float32) + b_ref[...]
        out = acc_ref[...] * invdeg_ref[...] + skip
        if apply_relu:
            out = jnp.maximum(out, 0.0)
        if apply_log_softmax:
            lane = jax.lax.broadcasted_iota(jnp.int32, out.shape, 1)
            mask = lane < n_valid_lanes
            masked = jnp.where(mask, out, -jnp.inf)
            m = jnp.max(masked, axis=-1, keepdims=True)
            s = out - m
            e = jnp.where(mask, jnp.exp(s), 0.0)
            lse = jnp.log(jnp.sum(e, axis=-1, keepdims=True))
            out = jnp.where(mask, s - lse, 0.0)  # zero padded lanes (no garbage)
        o_ref[...] = out.astype(o_ref.dtype)


def sage_layer(a_i8, x_pad, inv_deg, w_cat, b, *, n_valid, apply_relu,
               apply_log_softmax, out_dtype, tm, tk):
    n_pad, f_in_pad = x_pad.shape
    f_out_pad = w_cat.shape[1] // 2
    n_row_tiles = n_pad // tm
    kernel = functools.partial(
        sage_layer_kernel, f_out_pad=f_out_pad, n_valid_lanes=n_valid,
        apply_relu=apply_relu, apply_log_softmax=apply_log_softmax)
    out_bytes = n_pad * f_out_pad * jnp.dtype(out_dtype).itemsize
    return pl.pallas_call(
        kernel,
        out_shape=jax.ShapeDtypeStruct((n_pad, f_out_pad), out_dtype),
        grid_spec=pltpu.PrefetchScalarGridSpec(
            num_scalar_prefetch=0,
            grid=(n_row_tiles, n_pad // tk),
            in_specs=[
                pl.BlockSpec((tm, tk), lambda i, k: (i, k)),                  # A (int8 0/1)
                pl.BlockSpec((tk, f_in_pad), lambda i, k: (k, 0)),            # x (neighbor slab)
                pl.BlockSpec((tm, f_in_pad), lambda i, k: (i, 0)),            # x (skip rows)
                pl.BlockSpec((f_in_pad, 2 * f_out_pad), lambda i, k: (0, 0)),  # [W_l | W_r]
                pl.BlockSpec((1, f_out_pad), lambda i, k: (0, 0)),            # bias
                pl.BlockSpec((tm, 1), lambda i, k: (i, 0)),                   # 1/deg
            ],
            out_specs=pl.BlockSpec((tm, f_out_pad), lambda i, k: (i, 0)),
            scratch_shapes=[pltpu.VMEM((tm, f_out_pad), jnp.float32)]),
        compiler_params=pltpu.CompilerParams(
            dimension_semantics=("parallel", "arbitrary"),
            vmem_limit_bytes=_VMEM_LIMIT),
        cost_estimate=pl.CostEstimate(
            flops=(2 * n_pad * n_pad * f_out_pad
                   + 2 * n_pad * f_in_pad * f_out_pad * (n_row_tiles + 1)),
            transcendentals=(n_pad * f_out_pad if apply_log_softmax else 0),
            bytes_accessed=(n_pad * n_pad                               # A int8
                            + n_pad * f_in_pad * 2 * (n_row_tiles + 1)  # x streams (bf16)
                            + f_in_pad * 2 * f_out_pad * 2              # W_cat
                            + n_pad * 4                                 # 1/deg
                            + out_bytes)),
    )(a_i8, x_pad, x_pad, w_cat, b, inv_deg)


# --------------------------------------------------------------------------
# Model wrapper
# --------------------------------------------------------------------------
class SAGE:
    def __init__(self, key, in_channels, hidden_channels, out_channels,
                 num_layers, dropout):
        self.dropout = dropout            # eval mode -> dropout is identity
        self.out_channels = out_channels

        layer_dims = [(in_channels, hidden_channels)]
        for _ in range(num_layers - 2):
            layer_dims.append((hidden_channels, hidden_channels))
        layer_dims.append((hidden_channels, out_channels))

        self.params = []   # unpadded f32 weights (used by the JAX reference)
        self.padded = []   # (W_cat bf16 (fi_pad, 2*fo_pad), b f32 (1, fo_pad), fi_pad, fo_pad)
        for (fi, fo) in layer_dims:
            key, k1, k2 = jax.random.split(key, 3)
            scale = 1.0 / jnp.sqrt(jnp.float32(fi))
            w_l = jax.random.uniform(k1, (fi, fo), jnp.float32, -scale, scale)
            w_r = jax.random.uniform(k2, (fi, fo), jnp.float32, -scale, scale)
            b = jnp.zeros((1, fo), jnp.float32)
            self.params.append((w_l, w_r, b))

            fi_p = _round_up(fi, LANE)
            fo_p = _round_up(fo, LANE)
            w_cat = jnp.concatenate(
                [_pad2(w_l, fi_p, fo_p), _pad2(w_r, fi_p, fo_p)],
                axis=1).astype(jnp.bfloat16)
            b_p = _pad2(b, 1, fo_p)
            self.padded.append((w_cat, b_p, fi_p, fo_p))

    @staticmethod
    def pack_adjacency(adj):
        """One-time adjacency pack (hoisted out of the forward pass): binary
        int8 adjacency padded to the tile multiple + per-row f32 1/deg."""
        n = adj.shape[0]
        n_pad, _, _ = _tiling(n)
        a_bin = adj > 0
        deg = jnp.sum(a_bin.astype(jnp.float32), axis=1, keepdims=True)
        inv_deg = jnp.where(deg > 0, 1.0 / deg, 0.0)
        a_i8 = _pad2(a_bin.astype(jnp.int8), n_pad, n_pad)
        inv_deg = _pad2(inv_deg, n_pad, 1)
        return a_i8, inv_deg

    def __call__(self, x, a_i8, inv_deg):
        n = x.shape[0]
        n_pad, tm, tk = _tiling(n)
        assert a_i8.shape == (n_pad, n_pad) and inv_deg.shape == (n_pad, 1)

        # Pad rows to the tile multiple, features to 128 lanes; bf16 activations.
        h = _pad2(x, n_pad, self.padded[0][2]).astype(jnp.bfloat16)

        n_layers = len(self.padded)
        out = None
        for i, (w_cat, b_p, fi_p, fo_p) in enumerate(self.padded):
            last = (i == n_layers - 1)
            out = sage_layer(
                a_i8, h, inv_deg, w_cat, b_p,
                n_valid=self.out_channels if last else fo_p,
                apply_relu=not last,
                apply_log_softmax=last,
                out_dtype=jnp.float32 if last else jnp.bfloat16,
                tm=tm, tk=tk)
            h = out
            # TODO(synk): dropout omitted (module evaluated with training=False -> identity).
        return out[:n, :self.out_channels]


def reference_forward(model, x, adj):
    """Plain-JAX reference mirroring the kernel's binary-A + 1/deg + bf16/f32 policy."""
    a_bin = (adj > 0).astype(jnp.float32)
    deg = jnp.sum(a_bin, axis=1, keepdims=True)
    inv_deg = jnp.where(deg > 0, 1.0 / deg, 0.0)
    a_bf = a_bin.astype(jnp.bfloat16)
    h = x.astype(jnp.bfloat16)
    n_layers = len(model.params)
    out = None
    for i, (w_l, w_r, b) in enumerate(model.params):
        wl = w_l.astype(jnp.bfloat16)
        wr = w_r.astype(jnp.bfloat16)
        proj = jnp.dot(h, wl, preferred_element_type=jnp.float32).astype(jnp.bfloat16)
        skip = jnp.dot(h, wr, preferred_element_type=jnp.float32) + b
        out = jnp.dot(a_bf, proj, preferred_element_type=jnp.float32) * inv_deg + skip
        if i < n_layers - 1:
            h = jnp.maximum(out, 0.0).astype(jnp.bfloat16)
        else:
            out = jax.nn.log_softmax(out, axis=-1)
    return out


if __name__ == "__main__":
    key = jax.random.PRNGKey(0)
    k_feat, k_adj, k_model = jax.random.split(key, 3)

    num_nodes = 512          # -> n_pad=512, tm=256 (2 row tiles), tk=512
    in_channels = 64
    hidden_channels = 64
    out_channels = 16
    num_layers = 3
    dropout = 0.5

    # Node features
    x = jax.random.normal(k_feat, (num_nodes, in_channels), jnp.float32)

    # Synthetic sparse-ish binary adjacency (no self loops); mean aggregation.
    adj = (jax.random.uniform(k_adj, (num_nodes, num_nodes)) < 0.05).astype(jnp.float32)
    adj = adj * (1.0 - jnp.eye(num_nodes, dtype=jnp.float32))

    model = SAGE(k_model, in_channels, hidden_channels, out_channels,
                 num_layers, dropout)

    # One-time adjacency packing (hoisted out of the per-call path).
    a_i8, inv_deg = SAGE.pack_adjacency(adj)
    a_i8, inv_deg = jax.block_until_ready((a_i8, inv_deg))

    out = model(x, a_i8, inv_deg)
    out = jax.block_until_ready(out)

    ref = reference_forward(model, x, adj)
    assert out.shape == (num_nodes, out_channels)
    assert jnp.allclose(out, ref, atol=3e-2, rtol=3e-2), "mismatch vs reference"

    print("KERNEL_OK")
</pallas_src>

<mosaic_0001>
module attributes {stable_mosaic.version = 11 : i64} {
  func.func @sage_layer_kernel(%arg0: i32, %arg1: i32, %arg2: memref<256x512xi8, #tpu.memory_space<vmem>>, %arg3: memref<512x128xbf16, #tpu.memory_space<vmem>>, %arg4: memref<256x128xbf16, #tpu.memory_space<vmem>>, %arg5: memref<128x256xbf16, #tpu.memory_space<vmem>>, %arg6: memref<1x128xf32, #tpu.memory_space<vmem>>, %arg7: memref<256x1xf32, #tpu.memory_space<vmem>>, %arg8: memref<256x128xbf16, #tpu.memory_space<vmem>>, %arg9: memref<256x128xf32, #tpu.memory_space<vmem>>) attributes {dimension_semantics = [#tpu.dimension_semantics<parallel>, #tpu.dimension_semantics<arbitrary>], iteration_bounds = array<i64: 2, 1>, scalar_prefetch = 0 : i64, scratch_operands = 1 : i64, tpu.core_type = #tpu.core_type<tc>, window_params = [{transform_indices = @transform_0, window_bounds = array<i64: 256, 512>}, {transform_indices = @transform_1, window_bounds = array<i64: 512, 128>}, {transform_indices = @transform_2, window_bounds = array<i64: 256, 128>}, {pipeline_mode = #tpu.pipeline_mode<synchronous>, transform_indices = @transform_3, window_bounds = array<i64: 128, 256>}, {pipeline_mode = #tpu.pipeline_mode<synchronous>, transform_indices = @transform_4, window_bounds = array<i64: 1, 128>}, {transform_indices = @transform_5, window_bounds = array<i64: 256, 1>}, {transform_indices = @transform_6, window_bounds = array<i64: 256, 128>}]} {
    %c0_i32 = arith.constant 0 : i32
    %0 = arith.cmpi eq, %arg1, %c0_i32 : i32
    %1 = arith.extui %0 : i1 to i32
    %c0_i32_0 = arith.constant 0 : i32
    %2 = arith.cmpi ne, %1, %c0_i32_0 : i32
    scf.if %2 {
      %cst_13 = arith.constant 0.000000e+00 : f32
      %17 = vector.broadcast %cst_13 : f32 to vector<256x128xf32>
      %c0_14 = arith.constant 0 : index
      %c0_15 = arith.constant 0 : index
      %18 = vector.load %arg9[%c0_14, %c0_15] : memref<256x128xf32, #tpu.memory_space<vmem>>, vector<256x128xf32>
      tpu.vector_store %arg9[%c0_14, %c0_15], %17 {strides = array<i32>} : memref<256x128xf32, #tpu.memory_space<vmem>>, vector<256x128xf32>,
    } else {
    }
    %c0 = arith.constant 0 : index
    %c0_1 = arith.constant 0 : index
    %3 = vector.load %arg3[%c0, %c0_1] : memref<512x128xbf16, #tpu.memory_space<vmem>>, vector<512x128xbf16>
    %c0_2 = arith.constant 0 : index
    %c0_3 = arith.constant 0 : index
    %4 = vector.load %arg5[%c0_2, %c0_3] : memref<128x256xbf16, #tpu.memory_space<vmem>>, vector<128x128xbf16>
    %cst = arith.constant dense<0.000000e+00> : vector<512x128xf32>
    %5 = tpu.matmul %3, %4, %cst {dimension_numbers = #tpu.dot_dimension_numbers<[1], [0], [0], [1], [0, 0, 1, 1], [], []>} : vector<512x128xbf16>, vector<128x128xbf16>, vector<512x128xf32> -> vector<512x128xf32>
    %6 = arith.truncf %5 : vector<512x128xf32> to vector<512x128xbf16>
    %c0_4 = arith.constant 0 : index
    %c0_5 = arith.constant 0 : index
    %7 = vector.load %arg2[%c0_4, %c0_5] : memref<256x512xi8, #tpu.memory_space<vmem>>, vector<256x512xi8>
    %8 = arith.sitofp %7 : vector<256x512xi8> to vector<256x512xf32>
    %9 = arith.truncf %8 : vector<256x512xf32> to vector<256x512xbf16>
    %c0_6 = arith.constant 0 : index
    %c0_7 = arith.constant 0 : index
    %10 = vector.load %arg9[%c0_6, %c0_7] : memref<256x128xf32, #tpu.memory_space<vmem>>, vector<256x128xf32>
    %cst_8 = arith.constant dense<0.000000e+00> : vector<256x128xf32>
    %11 = tpu.matmul %9, %6, %cst_8 {dimension_numbers = #tpu.dot_dimension_numbers<[1], [0], [0], [1], [0, 0, 1, 1], [], []>} : vector<256x512xbf16>, vector<512x128xbf16>, vector<256x128xf32> -> vector<256x128xf32>
    %12 = arith.addf %10, %11 : vector<256x128xf32>
    %c0_9 = arith.constant 0 : index
    %c0_10 = arith.constant 0 : index
    %13 = vector.load %arg9[%c0_9, %c0_10] : memref<256x128xf32, #tpu.memory_space<vmem>>, vector<256x128xf32>
    tpu.vector_store %arg9[%c0_9, %c0_10], %12 {strides = array<i32>} : memref<256x128xf32, #tpu.memory_space<vmem>>, vector<256x128xf32>,
    %c0_i32_11 = arith.constant 0 : i32
    %14 = arith.cmpi eq, %arg1, %c0_i32_11 : i32
    %15 = arith.extui %14 : i1 to i32
    %c0_i32_12 = arith.constant 0 : i32
    %16 = arith.cmpi ne, %15, %c0_i32_12 : i32
    scf.if %16 {
      %c0_13 = arith.constant 0 : index
      %c0_14 = arith.constant 0 : index
      %17 = vector.load %arg4[%c0_13, %c0_14] : memref<256x128xbf16, #tpu.memory_space<vmem>>, vector<256x128xbf16>
      %c0_15 = arith.constant 0 : index
      %c128 = arith.constant 128 : index
      %18 = vector.load %arg5[%c0_15, %c128] : memref<128x256xbf16, #tpu.memory_space<vmem>>, vector<128x128xbf16>
      %cst_16 = arith.constant dense<0.000000e+00> : vector<256x128xf32>
      %19 = tpu.matmul %17, %18, %cst_16 {dimension_numbers = #tpu.dot_dimension_numbers<[1], [0], [0], [1], [0, 0, 1, 1], [], []>} : vector<256x128xbf16>, vector<128x128xbf16>, vector<256x128xf32> -> vector<256x128xf32>
      %c0_17 = arith.constant 0 : index
      %c0_18 = arith.constant 0 : index
      %20 = vector.load %arg6[%c0_17, %c0_18] : memref<1x128xf32, #tpu.memory_space<vmem>>, vector<1x128xf32>
      %21 = vector.broadcast %20 : vector<1x128xf32> to vector<256x128xf32>
      %22 = arith.addf %19, %21 : vector<256x128xf32>
      %c0_19 = arith.constant 0 : index
      %c0_20 = arith.constant 0 : index
      %23 = vector.load %arg9[%c0_19, %c0_20] : memref<256x128xf32, #tpu.memory_space<vmem>>, vector<256x128xf32>
      %c0_21 = arith.constant 0 : index
      %c0_22 = arith.constant 0 : index
      %24 = vector.load %arg7[%c0_21, %c0_22] : memref<256x1xf32, #tpu.memory_space<vmem>>, vector<256x1xf32>
      %25 = vector.broadcast %24 : vector<256x1xf32> to vector<256x128xf32>
      %26 = arith.mulf %23, %25 : vector<256x128xf32>
      %27 = arith.addf %26, %22 : vector<256x128xf32>
      %cst_23 = arith.constant 0.000000e+00 : f32
      %28 = vector.broadcast %cst_23 : f32 to vector<256x128xf32>
      %29 = arith.maximumf %27, %28 : vector<256x128xf32>
      %30 = arith.truncf %29 : vector<256x128xf32> to vector<256x128xbf16>
      %c0_24 = arith.constant 0 : index
      %c0_25 = arith.constant 0 : index
      %31 = vector.load %arg8[%c0_24, %c0_25] : memref<256x128xbf16, #tpu.memory_space<vmem>>, vector<256x128xbf16>
      tpu.vector_store %arg8[%c0_24, %c0_25], %30 {strides = array<i32>} : memref<256x128xbf16, #tpu.memory_space<vmem>>, vector<256x128xbf16>,
    } else {
    }
    return
  }
  func.func @transform_0(%arg0: i32, %arg1: i32) -> (i32, i32) {
    %c0_i32 = arith.constant 0 : i32
    return %arg0, %arg1 : i32, i32
  }
  func.func @transform_1(%arg0: i32, %arg1: i32) -> (i32, i32) {
    %c0_i32 = arith.constant 0 : i32
    %c0_i32_0 = arith.constant 0 : i32
    return %arg1, %c0_i32 : i32, i32
  }
  func.func @transform_2(%arg0: i32, %arg1: i32) -> (i32, i32) {
    %c0_i32 = arith.constant 0 : i32
    %c0_i32_0 = arith.constant 0 : i32
    return %arg0, %c0_i32 : i32, i32
  }
  func.func @transform_3(%arg0: i32, %arg1: i32) -> (i32, i32) {
    %c0_i32 = arith.constant 0 : i32
    %c0_i32_0 = arith.constant 0 : i32
    %c0_i32_1 = arith.constant 0 : i32
    return %c0_i32, %c0_i32_0 : i32, i32
  }
  func.func @transform_4(%arg0: i32, %arg1: i32) -> (i32, i32) {
    %c0_i32 = arith.constant 0 : i32
    %c0_i32_0 = arith.constant 0 : i32
    %c0_i32_1 = arith.constant 0 : i32
    return %c0_i32, %c0_i32_0 : i32, i32
  }
  func.func @transform_5(%arg0: i32, %arg1: i32) -> (i32, i32) {
    %c0_i32 = arith.constant 0 : i32
    %c0_i32_0 = arith.constant 0 : i32
    return %arg0, %c0_i32 : i32, i32
  }
  func.func @transform_6(%arg0: i32, %arg1: i32) -> (i32, i32) {
    %c0_i32 = arith.constant 0 : i32
    %c0_i32_0 = arith.constant 0 : i32
    return %arg0, %c0_i32 : i32, i32
  }
}

</mosaic_0001>

<llo_original>
// kernel: tpu_custom_call.1
$region0: #{tpu_custom_call.1}
  #allocation0 [shape = 'u32[]', space=smem, size = 0x4, offset = 0x4, fixed_abs, tag = 'smem constant byte address 0x4 - core index']
  #allocation1 [shape = 'u32[144,128]{1,0:T(1,128)}', space=vmem, size = 0x12000, scoped, tag = 'internal scratch']
  #allocation2 [shape = 'f32[256,128]{1,0:T(8,128)}', space=vmem, size = 0x20000, scoped, tag = 'scratch operand']
  %s0 = inlined_call_operand.vmem [shape: s8[512,512], index: 0, kind: input, shape index: {}]
  %s1 = inlined_call_operand.hbm [shape: bf16[512,128], index: 1, kind: input, shape index: {}]
  %s2 = inlined_call_operand.hbm [shape: bf16[512,128], index: 2, kind: input, shape index: {}]
  %s3 = inlined_call_operand.hbm [shape: bf16[128,256], index: 3, kind: input, shape index: {}]
  %s4 = inlined_call_operand.vmem [shape: f32[1,128], index: 4, kind: input, shape index: {}]
  %s5 = inlined_call_operand.vmem [shape: f32[512,1], index: 5, kind: input, shape index: {}]
  %s6 = inlined_call_operand.hbm [shape: bf16[512,128], index: 6, kind: output, shape index: {}]
  %s7 = sld [smem:[#allocation0]]
  $region77: #{tpu_custom_call.1} parent=0
    _
  %s9 = ssub.s32 1, %s7
  %s10 = scalar_select 0, %s9, %s7
  $region1: #{tpu_custom_call.1} parent=0
    #allocation3 [shape = 'u8[131072]{0}', space=vmem, size = 0x20000, scoped, tag = 'input window, operand 1, single buffered']
    #allocation4 [shape = 's32[2]{0}', space=sflag, size = 0x8, scoped, tag = 'scoped memory for tpu_custom_call.1']
    #allocation5 [shape = 's32[2]{0}', space=sflag, size = 0x8, scoped, tag = 'scoped memory for tpu_custom_call.1']
    #allocation6 [shape = 'u8[131072]{0}', space=vmem, size = 0x20000, scoped, tag = 'input window, operand 2']
    #allocation7 [shape = 's32[2]{0}', space=sflag, size = 0x8, scoped, tag = 'scoped memory for tpu_custom_call.1']
    #allocation8 [shape = 'u8[65536]{0}', space=vmem, size = 0x10000, scoped, tag = 'input window, operand 3, single buffered']
    #allocation9 [shape = 'u8[131072]{0}', space=vmem, size = 0x20000, scoped, tag = 'output window, operand 0']
    %11 = vsyncpa [#allocation4], 0
    %12 = vsyncpa [#allocation7], 0
    %s13 = scalar_lea.sflag [#allocation7], 1
    %14 = vsyncpa %s13, 0
    %15 = vsyncpa [#allocation5], 0
    %s16 = scalar_lea.sflag [#allocation5], 1
    %17 = vsyncpa %s16, 0
    loop: start=0, step=1, limit=4
    $region2: #{tpu_custom_call.1} parent=1 // loop_pre_header
      _
    $region3: #{tpu_custom_call.1} parent=1 // loop_header
      %s19 = sphi 0, %s23
      %p20 = scmp.ge.s32.totalorder %s19, 4
      %s26 = sphi 0, %s38
      %s27 = sphi 0, %s34
      %s28 = sphi 0, %s26
      %s29 = sphi 0, %s27
      %s30 = sphi 0, %s28
      %s31 = sphi 0, %s29
      %s43 = sphi 0, %s45
      %s46 = sphi 0, %s43
      %s47 = sphi 0, %s46
      %s63 = sphi 0, %s47
      %s69 = sphi 0, %s71
      %s72 = sphi 0, %s69
      %s73 = sphi 0, %s72
      %s89 = sphi 0, %s73
      %s95 = sphi 0, %s97
      %s98 = sphi 0, %s95
      %s99 = sphi 0, %s98
      %s115 = sphi 0, %s99
      %s119 = sphi 0, %s119
      %s121 = sphi 0, %s119
      %s122 = sphi 0, %s121
      %s136 = sphi 0, %s122
      %s140 = sphi 0, %s140
      %s142 = sphi 0, %s140
      %s143 = sphi 0, %s142
      %s157 = sphi 0, %s143
      %s163 = sphi 0, %s165
      %s166 = sphi 0, %s163
      %s167 = sphi 0, %s166
      %s183 = sphi 0, %s167
      %s189 = sphi 0, %s191
      %s192 = sphi 0, %s189
      %s193 = sphi 0, %s192
      %s209 = sphi 0, %s193
    $region4: #{tpu_custom_call.1} parent=1 // loop_header_branch
      %22 = sbr.rel (%p20) target = $region8
    $region5: #{tpu_custom_call.1} parent=1 // loop_body
      %s24 = ssub.s32 %s19, 1
      %s25 = ssub.s32 %s19, 2
      %s32 = sadd.s32 1, %s27
      %p33 = scmp.ge.s32.totalorder %s32, 1
      %s34 = scalar_select %p33, 0, %s32
      %s35 = sadd.s32 1, %s26
      %s36 = scalar_select %p33, %s35, %s26
      %p37 = scmp.ge.s32.totalorder %s36, 2
      %s38 = scalar_select %p37, 0, %s36
      %s39 = ssub.s32 %s26, %s38
      %s40 = ssub.s32 %s27, %s34
      %s41 = sor.u32 %s39, %s40
      %p42 = scmp.eq.s32.totalorder %s41, 0
      %s44 = sadd.s32 %s43, 1
      %s45 = scalar_select %p42, %s43, %s44
      %p48 = pneg %p42
      %p49 = scmp.eq.s32.totalorder %s19, 1
      %p50 = por %p48, %p49
      %p51 = scmp.ne.s32.totalorder %s43, %s46
      %p52 = scmp.eq.s32.totalorder %s19, 0
      %p53 = por %p51, %p52
      %p54 = scmp.ne.s32.totalorder %s43, %s46
      %p55 = scmp.eq.s32.totalorder %s24, 1
      %p56 = por %p54, %p55
      %p57 = scmp.ne.s32.totalorder %s46, %s47
      %p58 = scmp.eq.s32.totalorder %s24, 0
      %p59 = por %p57, %p58
      %p60 = scmp.ne.s32.totalorder %s46, %s47
      %p61 = scmp.eq.s32.totalorder %s25, 1
      %p62 = por %p60, %p61
      %p64 = scmp.ne.s32.totalorder %s47, %s63
      %p65 = scmp.eq.s32.totalorder %s25, 0
      %p66 = por %p64, %p65
      %s67 = ssub.s32 %s27, %s34
      %p68 = scmp.eq.s32.totalorder %s67, 0
      %s70 = sadd.s32 %s69, 1
      %s71 = scalar_select %p68, %s69, %s70
      %p74 = pneg %p68
      %p75 = scmp.eq.s32.totalorder %s19, 1
      %p76 = por %p74, %p75
      %p77 = scmp.ne.s32.totalorder %s69, %s72
      %p78 = scmp.eq.s32.totalorder %s19, 0
      %p79 = por %p77, %p78
      %p80 = scmp.ne.s32.totalorder %s69, %s72
      %p81 = scmp.eq.s32.totalorder %s24, 1
      %p82 = por %p80, %p81
      %p83 = scmp.ne.s32.totalorder %s72, %s73
      %p84 = scmp.eq.s32.totalorder %s24, 0
      %p85 = por %p83, %p84
      %p86 = scmp.ne.s32.totalorder %s72, %s73
      %p87 = scmp.eq.s32.totalorder %s25, 1
      %p88 = por %p86, %p87
      %p90 = scmp.ne.s32.totalorder %s73, %s89
      %p91 = scmp.eq.s32.totalorder %s25, 0
      %p92 = por %p90, %p91
      %s93 = ssub.s32 %s26, %s38
      %p94 = scmp.eq.s32.totalorder %s93, 0
      %s96 = sadd.s32 %s95, 1
      %s97 = scalar_select %p94, %s95, %s96
      %p100 = pneg %p94
      %p101 = scmp.eq.s32.totalorder %s19, 1
      %p102 = por %p100, %p101
      %p103 = scmp.ne.s32.totalorder %s95, %s98
      %p104 = scmp.eq.s32.totalorder %s19, 0
      %p105 = por %p103, %p104
      %p106 = scmp.ne.s32.totalorder %s95, %s98
      %p107 = scmp.eq.s32.totalorder %s24, 1
      %p108 = por %p106, %p107
      %p109 = scmp.ne.s32.totalorder %s98, %s99
      %p110 = scmp.eq.s32.totalorder %s24, 0
      %p111 = por %p109, %p110
      %p112 = scmp.ne.s32.totalorder %s98, %s99
      %p113 = scmp.eq.s32.totalorder %s25, 1
      %p114 = por %p112, %p113
      %p116 = scmp.ne.s32.totalorder %s99, %s115
      %p117 = scmp.eq.s32.totalorder %s25, 0
      %p118 = por %p116, %p117
      %s120 = sadd.s32 %s119, 1
      %p123 = scmp.eq.s32.totalorder %s19, 1
      %p124 = scmp.ne.s32.totalorder %s119, %s121
      %p125 = scmp.eq.s32.totalorder %s19, 0
      %p126 = por %p124, %p125
      %p127 = scmp.ne.s32.totalorder %s119, %s121
      %p128 = scmp.eq.s32.totalorder %s24, 1
      %p129 = por %p127, %p128
      %p130 = scmp.ne.s32.totalorder %s121, %s122
      %p131 = scmp.eq.s32.totalorder %s24, 0
      %p132 = por %p130, %p131
      %p133 = scmp.ne.s32.totalorder %s121, %s122
      %p134 = scmp.eq.s32.totalorder %s25, 1
      %p135 = por %p133, %p134
      %p137 = scmp.ne.s32.totalorder %s122, %s136
      %p138 = scmp.eq.s32.totalorder %s25, 0
      %p139 = por %p137, %p138
      %s141 = sadd.s32 %s140, 1
      %p144 = scmp.eq.s32.totalorder %s19, 1
      %p145 = scmp.ne.s32.totalorder %s140, %s142
      %p146 = scmp.eq.s32.totalorder %s19, 0
      %p147 = por %p145, %p146
      %p148 = scmp.ne.s32.totalorder %s140, %s142
      %p149 = scmp.eq.s32.totalorder %s24, 1
      %p150 = por %p148, %p149
      %p151 = scmp.ne.s32.totalorder %s142, %s143
      %p152 = scmp.eq.s32.totalorder %s24, 0
      %p153 = por %p151, %p152
      %p154 = scmp.ne.s32.totalorder %s142, %s143
      %p155 = scmp.eq.s32.totalorder %s25, 1
      %p156 = por %p154, %p155
      %p158 = scmp.ne.s32.totalorder %s143, %s157
      %p159 = scmp.eq.s32.totalorder %s25, 0
      %p160 = por %p158, %p159
      %s161 = ssub.s32 %s26, %s38
      %p162 = scmp.eq.s32.totalorder %s161, 0
      %s164 = sadd.s32 %s163, 1
      %s165 = scalar_select %p162, %s163, %s164
      %p168 = pneg %p162
      %p169 = scmp.eq.s32.totalorder %s19, 1
      %p170 = por %p168, %p169
      %p171 = scmp.ne.s32.totalorder %s163, %s166
      %p172 = scmp.eq.s32.totalorder %s19, 0
      %p173 = por %p171, %p172
      %p174 = scmp.ne.s32.totalorder %s163, %s166
      %p175 = scmp.eq.s32.totalorder %s24, 1
      %p176 = por %p174, %p175
      %p177 = scmp.ne.s32.totalorder %s166, %s167
      %p178 = scmp.eq.s32.totalorder %s24, 0
      %p179 = por %p177, %p178
      %p180 = scmp.ne.s32.totalorder %s166, %s167
      %p181 = scmp.eq.s32.totalorder %s25, 1
      %p182 = por %p180, %p181
      %p184 = scmp.ne.s32.totalorder %s167, %s183
      %p185 = scmp.eq.s32.totalorder %s25, 0
      %p186 = por %p184, %p185
      %s187 = ssub.s32 %s26, %s38
      %p188 = scmp.eq.s32.totalorder %s187, 0
      %s190 = sadd.s32 %s189, 1
      %s191 = scalar_select %p188, %s189, %s190
      %p194 = pneg %p188
      %p195 = scmp.eq.s32.totalorder %s19, 1
      %p196 = por %p194, %p195
      %p197 = scmp.ne.s32.totalorder %s189, %s192
      %p198 = scmp.eq.s32.totalorder %s19, 0
      %p199 = por %p197, %p198
      %p200 = scmp.ne.s32.totalorder %s189, %s192
      %p201 = scmp.eq.s32.totalorder %s24, 1
      %p202 = por %p200, %p201
      %p203 = scmp.ne.s32.totalorder %s192, %s193
      %p204 = scmp.eq.s32.totalorder %s24, 0
      %p205 = por %p203, %p204
      %p206 = scmp.ne.s32.totalorder %s192, %s193
      %p207 = scmp.eq.s32.totalorder %s25, 1
      %p208 = por %p206, %p207
      %p210 = scmp.ne.s32.totalorder %s193, %s209
      %p211 = scmp.eq.s32.totalorder %s25, 0
      %p212 = por %p210, %p211
      %p213 = scmp.le.s32.totalorder 1, %s19
      %p214 = scmp.lt.s32.totalorder %s19, 3
      %p215 = pnand %p213, %p214
      %p216 = pneg %p215
      // Predicated region
      $region9: #{tpu_custom_call.1} parent=5 // pred_check
        _
      $region10: #{tpu_custom_call.1} parent=5 // pred_check_branch
        %218 = sbr.rel (%p215) target = $region12
      $region11: #{tpu_custom_call.1} parent=5 // pred_region
        %s219 = ssub.s32 %s19, 1
        // Predicated region
        $region13: #{tpu_custom_call.1} parent=11 // pred_check
          %p220 = pneg %p85
        $region14: #{tpu_custom_call.1} parent=11 // pred_check_branch
          %222 = sbr.rel (%p220) target = $region16
        $region15: #{tpu_custom_call.1} parent=11 // pred_region
          %s223 = smul.u32 64, %s29
          %s225 = ssub.s32 4096, 4096
          %226 = vsyncadd [#allocation4], %s225
          %s227 = smul.addr %s223, 64
          %s228 = scalar_lea.hbm %s1, %s227
          %s229 = sshll.u32 [#allocation3], 4
          %s230 = int_to_ptr.vmem [resolvable:$true] %s229
          %235 = dma.hbm_to_vmem [thread:$0]  %s228, 4096, %s230, [#allocation4], 64, 64, 4
        $region16: #{tpu_custom_call.1} parent=11 // pred_fallthru
          _
        // Predicated region
        $region17: #{tpu_custom_call.1} parent=11 // pred_check
          %p236 = pneg %p132
        $region18: #{tpu_custom_call.1} parent=11 // pred_check_branch
          %238 = sbr.rel (%p236) target = $region20
        $region19: #{tpu_custom_call.1} parent=11 // pred_region
          %s240 = ssub.s32 2048, 2048
          %241 = vsyncadd [#allocation7], %s240
          %s242 = sshll.u32 [#allocation8], 4
          %s243 = int_to_ptr.vmem [resolvable:$true] %s242
          %248 = dma.hbm_to_vmem [thread:$0]  %s3, 2048, %s243, [#allocation7], 128, 128, 8
        $region20: #{tpu_custom_call.1} parent=11 // pred_fallthru
          _
        // Predicated region
        $region21: #{tpu_custom_call.1} parent=11 // pred_check
          %p249 = pneg %p153
        $region22: #{tpu_custom_call.1} parent=11 // pred_check_branch
          %251 = sbr.rel (%p249) target = $region24
        $region23: #{tpu_custom_call.1} parent=11 // pred_region
          _
        $region24: #{tpu_custom_call.1} parent=11 // pred_fallthru
          _
      $region12: #{tpu_custom_call.1} parent=5 // pred_fallthru
        _
      %p252 = scmp.lt.s32.totalorder %s19, 2
      // Predicated region
      $region25: #{tpu_custom_call.1} parent=5 // pred_check
        %p253 = pneg %p252
      $region26: #{tpu_custom_call.1} parent=5 // pred_check_branch
        %255 = sbr.rel (%p253) target = $region28
      $region27: #{tpu_custom_call.1} parent=5 // pred_region
        // Predicated region
        $region29: #{tpu_custom_call.1} parent=27 // pred_check
          %p256 = pneg %p53
        $region30: #{tpu_custom_call.1} parent=27 // pred_check_branch
          %258 = sbr.rel (%p256) target = $region32
        $region31: #{tpu_custom_call.1} parent=27 // pred_region
          %s259 = smul.u32 8, %s26
          %s260 = smul.u32 4, %s27
          %p261 = scmp.lt.s32.totalorder %s259, 15
          %s262 = scalar_select %p261, %s259, 15
          %p263 = scmp.lt.s32.totalorder %s260, 3
          %s264 = scalar_select %p263, %s260, 3
          %s265 = smul.addr %s262, 4
          %s266 = sadd.s32 %s264, %s265
          %s267 = smul.addr %s266, 8
          %s268 = scalar_lea.vmem %s0, %s267
          %s269 = smul.u32 8, %s26
          %s270 = smul.u32 4, %s27
        $region32: #{tpu_custom_call.1} parent=27 // pred_fallthru
          _
        // Predicated region
        $region33: #{tpu_custom_call.1} parent=27 // pred_check
          %p271 = pneg %p105
        $region34: #{tpu_custom_call.1} parent=27 // pred_check_branch
          %273 = sbr.rel (%p271) target = $region36
        $region35: #{tpu_custom_call.1} parent=27 // pred_region
          %s274 = sand.u32 %s19, 1
          %s275 = scalar_lea.sflag [#allocation7], %s274
          %s276 = sand.u32 %s95, 1
          %s277 = smul.addr %s276, 128
          %s278 = scalar_lea.vmem [#allocation6], %s277
          %s279 = smul.u32 32, %s26
          %s281 = ssub.s32 2048, 2048
          %282 = vsyncadd %s275, %s281
          %s283 = smul.addr %s279, 64
          %s284 = scalar_lea.hbm %s2, %s283
          %s285 = sshll.u32 %s278, 4
          %s286 = int_to_ptr.vmem [resolvable:$true] %s285
          %291 = dma.hbm_to_vmem [thread:$0]  %s284, 2048, %s286, %s275, 64, 64, 4
        $region36: #{tpu_custom_call.1} parent=27 // pred_fallthru
          _
        // Predicated region
        $region37: #{tpu_custom_call.1} parent=27 // pred_check
          %p292 = pneg %p173
        $region38: #{tpu_custom_call.1} parent=27 // pred_check_branch
          %294 = sbr.rel (%p292) target = $region40
        $region39: #{tpu_custom_call.1} parent=27 // pred_region
          %s295 = smul.u32 32, %s26
          %p296 = scmp.lt.s32.totalorder %s295, 63
          %s297 = scalar_select %p296, %s295, 63
          %s298 = smul.addr %s297, 8
          %s299 = scalar_lea.vmem %s5, %s298
          %s300 = smul.u32 32, %s26
        $region40: #{tpu_custom_call.1} parent=27 // pred_fallthru
          _
      $region28: #{tpu_custom_call.1} parent=5 // pred_fallthru
        _
      %p301 = scmp.le.s32.totalorder 1, %s19
      %p302 = scmp.lt.s32.totalorder %s19, 3
      %p303 = pnand %p301, %p302
      %p304 = pneg %p303
      // Predicated region
      $region41: #{tpu_custom_call.1} parent=5 // pred_check
        _
      $region42: #{tpu_custom_call.1} parent=5 // pred_check_branch
        %306 = sbr.rel (%p303) target = $region44
      $region43: #{tpu_custom_call.1} parent=5 // pred_region
        %s307 = ssub.s32 %s19, 1
        // Predicated region
        $region45: #{tpu_custom_call.1} parent=43 // pred_check
          %p308 = pneg %p85
        $region46: #{tpu_custom_call.1} parent=43 // pred_check_branch
          %310 = sbr.rel (%p308) target = $region48
        $region47: #{tpu_custom_call.1} parent=43 // pred_region
          %311 = dma.done [#allocation4], 4096
        $region48: #{tpu_custom_call.1} parent=43 // pred_fallthru
          _
        %s312 = sand.u32 %s24, 1
        %s313 = scalar_lea.sflag [#allocation7], %s312
        %s314 = sand.u32 %s98, 1
        %s315 = smul.addr %s314, 128
        %s316 = scalar_lea.vmem [#allocation6], %s315
        // Predicated region
        $region49: #{tpu_custom_call.1} parent=43 // pred_check
          %p317 = pneg %p111
        $region50: #{tpu_custom_call.1} parent=43 // pred_check_branch
          %319 = sbr.rel (%p317) target = $region52
        $region51: #{tpu_custom_call.1} parent=43 // pred_region
          %320 = dma.done %s313, 2048
        $region52: #{tpu_custom_call.1} parent=43 // pred_fallthru
          _
        // Predicated region
        $region53: #{tpu_custom_call.1} parent=43 // pred_check
          %p321 = pneg %p132
        $region54: #{tpu_custom_call.1} parent=43 // pred_check_branch
          %323 = sbr.rel (%p321) target = $region56
        $region55: #{tpu_custom_call.1} parent=43 // pred_region
          %324 = dma.done [#allocation7], 2048
        $region56: #{tpu_custom_call.1} parent=43 // pred_fallthru
          _
        %s325 = smul.u32 8, %s28
        %s326 = smul.u32 4, %s29
        %p327 = scmp.lt.s32.totalorder %s325, 15
        %s328 = scalar_select %p327, %s325, 15
        %p329 = scmp.lt.s32.totalorder %s326, 3
        %s330 = scalar_select %p329, %s326, 3
        %s331 = smul.addr %s328, 4
        %s332 = sadd.s32 %s330, %s331
        %s333 = smul.addr %s332, 8
        %s334 = scalar_lea.vmem %s0, %s333
        %p335 = pneg %p59
        %p336 = pneg %p56
        %p337 = pneg %p85
        %p338 = pneg %p82
        %s339 = sand.u32 %s24, 1
        %s340 = scalar_lea.sflag [#allocation7], %s339
        %s341 = sand.u32 %s98, 1
        %s342 = smul.addr %s341, 128
        %s343 = scalar_lea.vmem [#allocation6], %s342
        %p344 = pneg %p111
        %p345 = pneg %p108
        %p346 = pneg %p132
        %p347 = pneg %p129
        %p348 = pneg %p153
        %p349 = pneg %p150
        %s350 = smul.u32 32, %s28
        %p351 = scmp.lt.s32.totalorder %s350, 63
        %s352 = scalar_select %p351, %s350, 63
        %s353 = smul.addr %s352, 8
        %s354 = scalar_lea.vmem %s5, %s353
        %p355 = pneg %p179
        %p356 = pneg %p176
        %p357 = pneg %p205
        %p358 = pneg %p202
        %s359 = sand.u32 %s192, 1
        %s360 = scalar_lea.sflag [#allocation5], %s359
        %s361 = sand.u32 %s192, 1
        %s362 = smul.addr %s361, 128
        %s363 = scalar_lea.vmem [#allocation9], %s362
        %s364 = smul.u32 8, %s28
        %s365 = smul.u32 4, %s29
        %p366 = scmp.lt.s32.totalorder %s364, 15
        %s367 = scalar_select %p366, %s364, 15
        %p368 = scmp.lt.s32.totalorder %s365, 3
        %s369 = scalar_select %p368, %s365, 3
        %s370 = smul.addr %s367, 4
        %s371 = sadd.s32 %s369, %s370
        %s372 = smul.addr %s371, 8
        %s373 = scalar_lea.vmem %s0, %s372
        %s374 = smul.u32 8, %s28
        %s375 = smul.u32 4, %s29
        %s376 = smul.u32 64, %s29
        %s377 = smul.u32 32, %s28
        %s378 = smul.u32 32, %s28
        %p379 = scmp.lt.s32.totalorder %s378, 63
        %s380 = scalar_select %p379, %s378, 63
        %s381 = smul.addr %s380, 8
        %s382 = scalar_lea.vmem %s5, %s381
        %s383 = smul.u32 32, %s28
        %s384 = smul.u32 32, %s28
        %p386 = scmp.eq.s32.totalorder %s29, 0
        // Predicated region
        $region57: #{tpu_custom_call.1} parent=43 // pred_check
          %p387 = pneg %p386
        $region58: #{tpu_custom_call.1} parent=43 // pred_check_branch
          %389 = sbr.rel (%p387) target = $region60
        $region59: #{tpu_custom_call.1} parent=43 // pred_region
          %390 = vst [vmem:[#allocation2] sm:$0xff] 0.0
          %391 = vst [vmem:[#allocation2 + $0x8] sm:$0xff] 0.0
          %392 = vst [vmem:[#allocation2 + $0x10] sm:$0xff] 0.0
          %393 = vst [vmem:[#allocation2 + $0x18] sm:$0xff] 0.0
          %394 = vst [vmem:[#allocation2 + $0x20] sm:$0xff] 0.0
          %395 = vst [vmem:[#allocation2 + $0x28] sm:$0xff] 0.0
          %396 = vst [vmem:[#allocation2 + $0x30] sm:$0xff] 0.0
          %397 = vst [vmem:[#allocation2 + $0x38] sm:$0xff] 0.0
          %398 = vst [vmem:[#allocation2 + $0x40] sm:$0xff] 0.0
          %399 = vst [vmem:[#allocation2 + $0x48] sm:$0xff] 0.0
          %400 = vst [vmem:[#allocation2 + $0x50] sm:$0xff] 0.0
          %401 = vst [vmem:[#allocation2 + $0x58] sm:$0xff] 0.0
          %402 = vst [vmem:[#allocation2 + $0x60] sm:$0xff] 0.0
          %403 = vst [vmem:[#allocation2 + $0x68] sm:$0xff] 0.0
          %404 = vst [vmem:[#allocation2 + $0x70] sm:$0xff] 0.0
          %405 = vst [vmem:[#allocation2 + $0x78] sm:$0xff] 0.0
          %406 = vst [vmem:[#allocation2 + $0x80] sm:$0xff] 0.0
          %407 = vst [vmem:[#allocation2 + $0x88] sm:$0xff] 0.0
          %408 = vst [vmem:[#allocation2 + $0x90] sm:$0xff] 0.0
          %409 = vst [vmem:[#allocation2 + $0x98] sm:$0xff] 0.0
          %410 = vst [vmem:[#allocation2 + $0xa0] sm:$0xff] 0.0
          %411 = vst [vmem:[#allocation2 + $0xa8] sm:$0xff] 0.0
          %412 = vst [vmem:[#allocation2 + $0xb0] sm:$0xff] 0.0
          %413 = vst [vmem:[#allocation2 + $0xb8] sm:$0xff] 0.0
          %414 = vst [vmem:[#allocation2 + $0xc0] sm:$0xff] 0.0
          %415 = vst [vmem:[#allocation2 + $0xc8] sm:$0xff] 0.0
          %416 = vst [vmem:[#allocation2 + $0xd0] sm:$0xff] 0.0
          %417 = vst [vmem:[#allocation2 + $0xd8] sm:$0xff] 0.0
          %418 = vst [vmem:[#allocation2 + $0xe0] sm:$0xff] 0.0
          %419 = vst [vmem:[#allocation2 + $0xe8] sm:$0xff] 0.0
          %420 = vst [vmem:[#allocation2 + $0xf0] sm:$0xff] 0.0
          %421 = vst [vmem:[#allocation2 + $0xf8] sm:$0xff] 0.0
        $region60: #{tpu_custom_call.1} parent=43 // pred_fallthru
          _
        %v422 = vld [vmem:[#allocation3] sm:$0xf]
        %v423 = vld [vmem:[#allocation3 + $0x4] sm:$0xf]
        %v424 = vld [vmem:[#allocation3 + $0x8] sm:$0xf]
        %v425 = vld [vmem:[#allocation3 + $0xc] sm:$0xf]
        %v426 = vld [vmem:[#allocation3 + $0x10] sm:$0xf]
        %v427 = vld [vmem:[#allocation3 + $0x14] sm:$0xf]
        %v428 = vld [vmem:[#allocation3 + $0x18] sm:$0xf]
        %v429 = vld [vmem:[#allocation3 + $0x1c] sm:$0xf]
        %v430 = vld [vmem:[#allocation3 + $0x20] sm:$0xf]
        %v431 = vld [vmem:[#allocation3 + $0x24] sm:$0xf]
        %v432 = vld [vmem:[#allocation3 + $0x28] sm:$0xf]
        %v433 = vld [vmem:[#allocation3 + $0x2c] sm:$0xf]
        %v434 = vld [vmem:[#allocation3 + $0x30] sm:$0xf]
        %v435 = vld [vmem:[#allocation3 + $0x34] sm:$0xf]
        %v436 = vld [vmem:[#allocation3 + $0x38] sm:$0xf]
        %v437 = vld [vmem:[#allocation3 + $0x3c] sm:$0xf]
        %v438 = vld [vmem:[#allocation3 + $0x40] sm:$0xf]
        %v439 = vld [vmem:[#allocation3 + $0x44] sm:$0xf]
        %v440 = vld [vmem:[#allocation3 + $0x48] sm:$0xf]
        %v441 = vld [vmem:[#allocation3 + $0x4c] sm:$0xf]
        %v442 = vld [vmem:[#allocation3 + $0x50] sm:$0xf]
        %v443 = vld [vmem:[#allocation3 + $0x54] sm:$0xf]
        %v444 = vld [vmem:[#allocation3 + $0x58] sm:$0xf]
        %v445 = vld [vmem:[#allocation3 + $0x5c] sm:$0xf]
        %v446 = vld [vmem:[#allocation3 + $0x60] sm:$0xf]
        %v447 = vld [vmem:[#allocation3 + $0x64] sm:$0xf]
        %v448 = vld [vmem:[#allocation3 + $0x68] sm:$0xf]
        %v449 = vld [vmem:[#allocation3 + $0x6c] sm:$0xf]
        %v450 = vld [vmem:[#allocation3 + $0x70] sm:$0xf]
        %v451 = vld [vmem:[#allocation3 + $0x74] sm:$0xf]
        %v452 = vld [vmem:[#allocation3 + $0x78] sm:$0xf]
        %v453 = vld [vmem:[#allocation3 + $0x7c] sm:$0xf]
        %v454 = vld [vmem:[#allocation3 + $0x80] sm:$0xf]
        %v455 = vld [vmem:[#allocation3 + $0x84] sm:$0xf]
        %v456 = vld [vmem:[#allocation3 + $0x88] sm:$0xf]
        %v457 = vld [vmem:[#allocation3 + $0x8c] sm:$0xf]
        %v458 = vld [vmem:[#allocation3 + $0x90] sm:$0xf]
        %v459 = vld [vmem:[#allocation3 + $0x94] sm:$0xf]
        %v460 = vld [vmem:[#allocation3 + $0x98] sm:$0xf]
        %v461 = vld [vmem:[#allocation3 + $0x9c] sm:$0xf]
        %v462 = vld [vmem:[#allocation3 + $0xa0] sm:$0xf]
        %v463 = vld [vmem:[#allocation3 + $0xa4] sm:$0xf]
        %v464 = vld [vmem:[#allocation3 + $0xa8] sm:$0xf]
        %v465 = vld [vmem:[#allocation3 + $0xac] sm:$0xf]
        %v466 = vld [vmem:[#allocation3 + $0xb0] sm:$0xf]
        %v467 = vld [vmem:[#allocation3 + $0xb4] sm:$0xf]
        %v468 = vld [vmem:[#allocation3 + $0xb8] sm:$0xf]
        %v469 = vld [vmem:[#allocation3 + $0xbc] sm:$0xf]
        %v470 = vld [vmem:[#allocation3 + $0xc0] sm:$0xf]
        %v471 = vld [vmem:[#allocation3 + $0xc4] sm:$0xf]
        %v472 = vld [vmem:[#allocation3 + $0xc8] sm:$0xf]
        %v473 = vld [vmem:[#allocation3 + $0xcc] sm:$0xf]
        %v474 = vld [vmem:[#allocation3 + $0xd0] sm:$0xf]
        %v475 = vld [vmem:[#allocation3 + $0xd4] sm:$0xf]
        %v476 = vld [vmem:[#allocation3 + $0xd8] sm:$0xf]
        %v477 = vld [vmem:[#allocation3 + $0xdc] sm:$0xf]
        %v478 = vld [vmem:[#allocation3 + $0xe0] sm:$0xf]
        %v479 = vld [vmem:[#allocation3 + $0xe4] sm:$0xf]
        %v480 = vld [vmem:[#allocation3 + $0xe8] sm:$0xf]
        %v481 = vld [vmem:[#allocation3 + $0xec] sm:$0xf]
        %v482 = vld [vmem:[#allocation3 + $0xf0] sm:$0xf]
        %v483 = vld [vmem:[#allocation3 + $0xf4] sm:$0xf]
        %v484 = vld [vmem:[#allocation3 + $0xf8] sm:$0xf]
        %v485 = vld [vmem:[#allocation3 + $0xfc] sm:$0xf]
        %v486 = vld [vmem:[#allocation8] sm:$0xf]
        %v487 = vld [vmem:[#allocation8 + $0x8] sm:$0xf]
        %v488 = vld [vmem:[#allocation8 + $0x10] sm:$0xf]
        %v489 = vld [vmem:[#allocation8 + $0x18] sm:$0xf]
        %v490 = vld [vmem:[#allocation8 + $0x20] sm:$0xf]
        %v491 = vld [vmem:[#allocation8 + $0x28] sm:$0xf]
        %v492 = vld [vmem:[#allocation8 + $0x30] sm:$0xf]
        %v493 = vld [vmem:[#allocation8 + $0x38] sm:$0xf]
        %v494 = vld [vmem:[#allocation8 + $0x40] sm:$0xf]
        %v495 = vld [vmem:[#allocation8 + $0x48] sm:$0xf]
        %v496 = vld [vmem:[#allocation8 + $0x50] sm:$0xf]
        %v497 = vld [vmem:[#allocation8 + $0x58] sm:$0xf]
        %v498 = vld [vmem:[#allocation8 + $0x60] sm:$0xf]
        %v499 = vld [vmem:[#allocation8 + $0x68] sm:$0xf]
        %v500 = vld [vmem:[#allocation8 + $0x70] sm:$0xf]
        %v501 = vld [vmem:[#allocation8 + $0x78] sm:$0xf]
        %v566 = vunpack.c.l.b16 %v422
        %v567 = vunpack.c.l.b16 %v423
        %v568 = vunpack.c.l.b16 %v424
        %v569 = vunpack.c.l.b16 %v425
        %v570 = vunpack.c.l.b16 %v426
        %v571 = vunpack.c.l.b16 %v427
        %v572 = vunpack.c.l.b16 %v428
        %v573 = vunpack.c.l.b16 %v429
        %v574 = vunpack.c.l.b16 %v430
        %v575 = vunpack.c.l.b16 %v431
        %v576 = vunpack.c.l.b16 %v432
        %v577 = vunpack.c.l.b16 %v433
        %v578 = vunpack.c.l.b16 %v434
        %v579 = vunpack.c.l.b16 %v435
        %v580 = vunpack.c.l.b16 %v436
        %v581 = vunpack.c.l.b16 %v437
        %v582 = vunpack.c.l.b16 %v438
        %v583 = vunpack.c.l.b16 %v439
        %v584 = vunpack.c.l.b16 %v440
        %v585 = vunpack.c.l.b16 %v441
        %v586 = vunpack.c.l.b16 %v442
        %v587 = vunpack.c.l.b16 %v443
        %v588 = vunpack.c.l.b16 %v444
        %v589 = vunpack.c.l.b16 %v445
        %v590 = vunpack.c.l.b16 %v446
        %v591 = vunpack.c.l.b16 %v447
        %v592 = vunpack.c.l.b16 %v448
        %v593 = vunpack.c.l.b16 %v449
        %v594 = vunpack.c.l.b16 %v450
        %v595 = vunpack.c.l.b16 %v451
        %v596 = vunpack.c.l.b16 %v452
        %v597 = vunpack.c.l.b16 %v453
        %v598 = vunpack.c.l.b16 %v454
        %v599 = vunpack.c.l.b16 %v455
        %v600 = vunpack.c.l.b16 %v456
        %v601 = vunpack.c.l.b16 %v457
        %v602 = vunpack.c.l.b16 %v458
        %v603 = vunpack.c.l.b16 %v459
        %v604 = vunpack.c.l.b16 %v460
        %v605 = vunpack.c.l.b16 %v461
        %v606 = vunpack.c.l.b16 %v462
        %v607 = vunpack.c.l.b16 %v463
        %v608 = vunpack.c.l.b16 %v464
        %v609 = vunpack.c.l.b16 %v465
        %v610 = vunpack.c.l.b16 %v466
        %v611 = vunpack.c.l.b16 %v467
        %v612 = vunpack.c.l.b16 %v468
        %v613 = vunpack.c.l.b16 %v469
        %v614 = vunpack.c.l.b16 %v470
        %v615 = vunpack.c.l.b16 %v471
        %v616 = vunpack.c.l.b16 %v472
        %v617 = vunpack.c.l.b16 %v473
        %v618 = vunpack.c.l.b16 %v474
        %v619 = vunpack.c.l.b16 %v475
        %v620 = vunpack.c.l.b16 %v476
        %v621 = vunpack.c.l.b16 %v477
        %v622 = vunpack.c.l.b16 %v478
        %v623 = vunpack.c.l.b16 %v479
        %v624 = vunpack.c.l.b16 %v480
        %v625 = vunpack.c.l.b16 %v481
        %v626 = vunpack.c.l.b16 %v482
        %v627 = vunpack.c.l.b16 %v483
        %v628 = vunpack.c.l.b16 %v484
        %v629 = vunpack.c.l.b16 %v485
        %v630 = vpack.c.b16 %v567, %v566
        %v631 = vpack.c.b16 %v569, %v568
        %v632 = vpack.c.b16 %v571, %v570
        %v633 = vpack.c.b16 %v573, %v572
        %v634 = vpack.c.b16 %v575, %v574
        %v635 = vpack.c.b16 %v577, %v576
        %v636 = vpack.c.b16 %v579, %v578
        %v637 = vpack.c.b16 %v581, %v580
        %v638 = vpack.c.b16 %v583, %v582
        %v639 = vpack.c.b16 %v585, %v584
        %v640 = vpack.c.b16 %v587, %v586
        %v641 = vpack.c.b16 %v589, %v588
        %v642 = vpack.c.b16 %v591, %v590
        %v643 = vpack.c.b16 %v593, %v592
        %v644 = vpack.c.b16 %v595, %v594
        %v645 = vpack.c.b16 %v597, %v596
        %v646 = vpack.c.b16 %v599, %v598
        %v647 = vpack.c.b16 %v601, %v600
        %v648 = vpack.c.b16 %v603, %v602
        %v649 = vpack.c.b16 %v605, %v604
        %v650 = vpack.c.b16 %v607, %v606
        %v651 = vpack.c.b16 %v609, %v608
        %v652 = vpack.c.b16 %v611, %v610
        %v653 = vpack.c.b16 %v613, %v612
        %v654 = vpack.c.b16 %v615, %v614
        %v655 = vpack.c.b16 %v617, %v616
        %v656 = vpack.c.b16 %v619, %v618
        %v657 = vpack.c.b16 %v621, %v620
        %v658 = vpack.c.b16 %v623, %v622
        %v659 = vpack.c.b16 %v625, %v624
        %v660 = vpack.c.b16 %v627, %v626
        %v661 = vpack.c.b16 %v629, %v628
        %v710 = vunpack.c.l.b16 %v486
        %v711 = vunpack.c.l.b16 %v487
        %v712 = vunpack.c.l.b16 %v488
        %v713 = vunpack.c.l.b16 %v489
        %v714 = vunpack.c.l.b16 %v490
        %v715 = vunpack.c.l.b16 %v491
        %v716 = vunpack.c.l.b16 %v492
        %v717 = vunpack.c.l.b16 %v493
        %v718 = vunpack.c.l.b16 %v494
        %v719 = vunpack.c.l.b16 %v495
        %v720 = vunpack.c.l.b16 %v496
        %v721 = vunpack.c.l.b16 %v497
        %v722 = vunpack.c.l.b16 %v498
        %v723 = vunpack.c.l.b16 %v499
        %v724 = vunpack.c.l.b16 %v500
        %v725 = vunpack.c.l.b16 %v501
        %v726 = vpack.c.b16 %v711, %v710
        %v727 = vpack.c.b16 %v713, %v712
        %v728 = vpack.c.b16 %v715, %v714
        %v729 = vpack.c.b16 %v717, %v716
        %v730 = vpack.c.b16 %v719, %v718
        %v731 = vpack.c.b16 %v721, %v720
        %v732 = vpack.c.b16 %v723, %v722
        %v733 = vpack.c.b16 %v725, %v724
        %742 = vmatprep.subr.bf16.mxu0 0
        %743 = vmatpush1.bf16.msra.mxu0 %v726
        %744 = vmatprep.subr.bf16.mxu0 0
        %745 = vmatpush1.bf16.msra.mxu0 %v727
        %746 = vmatprep.subr.bf16.mxu0 0
        %747 = vmatpush1.bf16.msra.mxu0 %v728
        %748 = vmatprep.subr.bf16.mxu0 0
        %749 = vmatpush1.bf16.msra.mxu0 %v729
        %750 = vmatprep.subr.bf16.mxu0 0
        %751 = vmatpush1.bf16.msra.mxu0 %v730
        %752 = vmatprep.subr.bf16.mxu0 0
        %753 = vmatpush1.bf16.msra.mxu0 %v731
        %754 = vmatprep.subr.bf16.mxu0 0
        %755 = vmatpush1.bf16.msra.mxu0 %v732
        %756 = vmatprep.subr.bf16.mxu0 0
        %757 = vmatpush1.bf16.msra.mxu0 %v733
        %758 = vmatprep.subr.bf16.mxu0 0
        %759 = vmatpush1.bf16.msra.mxu0 0
        %760 = vmatprep.subr.bf16.mxu0 0
        %761 = vmatpush1.bf16.msra.mxu0 0
        %762 = vmatprep.subr.bf16.mxu0 0
        %763 = vmatpush1.bf16.msra.mxu0 0
        %764 = vmatprep.subr.bf16.mxu0 0
        %765 = vmatpush1.bf16.msra.mxu0 0
        %766 = vmatprep.subr.bf16.mxu0 0
        %767 = vmatpush1.bf16.msra.mxu0 0
        %768 = vmatprep.subr.bf16.mxu0 0
        %769 = vmatpush1.bf16.msra.mxu0 0
        %770 = vmatprep.subr.bf16.mxu0 0
        %771 = vmatpush1.bf16.msra.mxu0 0
        %772 = vmatprep.subr.bf16.mxu0 0
        %773 = vmatpush1.bf16.msra.mxu0 0
        %774 = vmatprep.mubr.bf16.mxu0 0
        %775 = vmatmul.mubr.bf16.gmra.mrb[0].mxu0 %v630
        %v776 = vpop.f32.mrb[0].mxu0
        %v777 = vadd.f32 0.0, %v776
        %v778 = vpop.f32.mrb[0].mxu0
        %v779 = vpop.f32.mrb[0].mxu0
        %v780 = vadd.f32 0.0, %v779
        %v781 = vpop.f32.mrb[0].mxu0
        %782 = vmatprep.mubr.bf16.mxu0 0
        %783 = vmatmul.mubr.bf16.gmra.mrb[0].mxu0 %v631
        %v784 = vpop.f32.mrb[0].mxu0
        %v785 = vadd.f32 0.0, %v784
        %v786 = vpop.f32.mrb[0].mxu0
        %v787 = vpop.f32.mrb[0].mxu0
        %v788 = vadd.f32 0.0, %v787
        %v789 = vpop.f32.mrb[0].mxu0
        %790 = vmatprep.mubr.bf16.mxu0 0
        %791 = vmatmul.mubr.bf16.gmra.mrb[0].mxu0 %v632
        %v792 = vpop.f32.mrb[0].mxu0
        %v793 = vadd.f32 0.0, %v792
        %v794 = vpop.f32.mrb[0].mxu0
        %v795 = vpop.f32.mrb[0].mxu0
        %v796 = vadd.f32 0.0, %v795
        %v797 = vpop.f32.mrb[0].mxu0
        %798 = vmatprep.mubr.bf16.mxu0 0
        %799 = vmatmul.mubr.bf16.gmra.mrb[0].mxu0 %v633
        %v800 = vpop.f32.mrb[0].mxu0
        %v801 = vadd.f32 0.0, %v800
        %v802 = vpop.f32.mrb[0].mxu0
        %v803 = vpop.f32.mrb[0].mxu0
        %v804 = vadd.f32 0.0, %v803
        %v805 = vpop.f32.mrb[0].mxu0
        %806 = vmatprep.mubr.bf16.mxu0 0
        %807 = vmatmul.mubr.bf16.gmra.mrb[0].mxu0 %v634
        %v808 = vpop.f32.mrb[0].mxu0
        %v809 = vadd.f32 0.0, %v808
        %v810 = vpop.f32.mrb[0].mxu0
        %v811 = vpop.f32.mrb[0].mxu0
        %v812 = vadd.f32 0.0, %v811
        %v813 = vpop.f32.mrb[0].mxu0
        %814 = vmatprep.mubr.bf16.mxu0 0
        %815 = vmatmul.mubr.bf16.gmra.mrb[0].mxu0 %v635
        %v816 = vpop.f32.mrb[0].mxu0
        %v817 = vadd.f32 0.0, %v816
        %v818 = vpop.f32.mrb[0].mxu0
        %v819 = vpop.f32.mrb[0].mxu0
        %v820 = vadd.f32 0.0, %v819
        %v821 = vpop.f32.mrb[0].mxu0
        %822 = vmatprep.mubr.bf16.mxu0 0
        %823 = vmatmul.mubr.bf16.gmra.mrb[0].mxu0 %v636
        %v824 = vpop.f32.mrb[0].mxu0
        %v825 = vadd.f32 0.0, %v824
        %v826 = vpop.f32.mrb[0].mxu0
        %v827 = vpop.f32.mrb[0].mxu0
        %v828 = vadd.f32 0.0, %v827
        %v829 = vpop.f32.mrb[0].mxu0
        %830 = vmatprep.mubr.bf16.mxu0 0
        %831 = vmatmul.mubr.bf16.gmra.mrb[0].mxu0 %v637
        %v832 = vpop.f32.mrb[0].mxu0
        %v833 = vadd.f32 0.0, %v832
        %v834 = vpop.f32.mrb[0].mxu0
        %v835 = vpop.f32.mrb[0].mxu0
        %v836 = vadd.f32 0.0, %v835
        %v837 = vpop.f32.mrb[0].mxu0
        %838 = vmatprep.mubr.bf16.mxu0 0
        %839 = vmatmul.mubr.bf16.gmra.mrb[0].mxu0 %v638
        %v840 = vpop.f32.mrb[0].mxu0
        %v841 = vadd.f32 0.0, %v840
        %v842 = vpop.f32.mrb[0].mxu0
        %v843 = vpop.f32.mrb[0].mxu0
        %v844 = vadd.f32 0.0, %v843
        %v845 = vpop.f32.mrb[0].mxu0
        %846 = vmatprep.mubr.bf16.mxu0 0
        %847 = vmatmul.mubr.bf16.gmra.mrb[0].mxu0 %v639
        %v848 = vpop.f32.mrb[0].mxu0
        %v849 = vadd.f32 0.0, %v848
        %v850 = vpop.f32.mrb[0].mxu0
        %v851 = vpop.f32.mrb[0].mxu0
        %v852 = vadd.f32 0.0, %v851
        %v853 = vpop.f32.mrb[0].mxu0
        %854 = vmatprep.mubr.bf16.mxu0 0
        %855 = vmatmul.mubr.bf16.gmra.mrb[0].mxu0 %v640
        %v856 = vpop.f32.mrb[0].mxu0
        %v857 = vadd.f32 0.0, %v856
        %v858 = vpop.f32.mrb[0].mxu0
        %v859 = vpop.f32.mrb[0].mxu0
        %v860 = vadd.f32 0.0, %v859
        %v861 = vpop.f32.mrb[0].mxu0
        %862 = vmatprep.mubr.bf16.mxu0 0
        %863 = vmatmul.mubr.bf16.gmra.mrb[0].mxu0 %v641
        %v864 = vpop.f32.mrb[0].mxu0
        %v865 = vadd.f32 0.0, %v864
        %v866 = vpop.f32.mrb[0].mxu0
        %v867 = vpop.f32.mrb[0].mxu0
        %v868 = vadd.f32 0.0, %v867
        %v869 = vpop.f32.mrb[0].mxu0
        %870 = vmatprep.mubr.bf16.mxu0 0
        %871 = vmatmul.mubr.bf16.gmra.mrb[0].mxu0 %v642
        %v872 = vpop.f32.mrb[0].mxu0
        %v873 = vadd.f32 0.0, %v872
        %v874 = vpop.f32.mrb[0].mxu0
        %v875 = vpop.f32.mrb[0].mxu0
        %v876 = vadd.f32 0.0, %v875
        %v877 = vpop.f32.mrb[0].mxu0
        %878 = vmatprep.mubr.bf16.mxu0 0
        %879 = vmatmul.mubr.bf16.gmra.mrb[0].mxu0 %v643
        %v880 = vpop.f32.mrb[0].mxu0
        %v881 = vadd.f32 0.0, %v880
        %v882 = vpop.f32.mrb[0].mxu0
        %v883 = vpop.f32.mrb[0].mxu0
        %v884 = vadd.f32 0.0, %v883
        %v885 = vpop.f32.mrb[0].mxu0
        %886 = vmatprep.mubr.bf16.mxu0 0
        %887 = vmatmul.mubr.bf16.gmra.mrb[0].mxu0 %v644
        %v888 = vpop.f32.mrb[0].mxu0
        %v889 = vadd.f32 0.0, %v888
        %v890 = vpop.f32.mrb[0].mxu0
        %v891 = vpop.f32.mrb[0].mxu0
        %v892 = vadd.f32 0.0, %v891
        %v893 = vpop.f32.mrb[0].mxu0
        %894 = vmatprep.mubr.bf16.mxu0 0
        %895 = vmatmul.mubr.bf16.gmra.mrb[0].mxu0 %v645
        %v896 = vpop.f32.mrb[0].mxu0
        %v897 = vadd.f32 0.0, %v896
        %v898 = vpop.f32.mrb[0].mxu0
        %v899 = vpop.f32.mrb[0].mxu0
        %v900 = vadd.f32 0.0, %v899
        %v901 = vpop.f32.mrb[0].mxu0
        %902 = vmatprep.mubr.bf16.mxu0 0
        %903 = vmatmul.mubr.bf16.gmra.mrb[0].mxu0 %v646
        %v904 = vpop.f32.mrb[0].mxu0
        %v905 = vadd.f32 0.0, %v904
        %v906 = vpop.f32.mrb[0].mxu0
        %v907 = vpop.f32.mrb[0].mxu0
        %v908 = vadd.f32 0.0, %v907
        %v909 = vpop.f32.mrb[0].mxu0
        %910 = vmatprep.mubr.bf16.mxu0 0
        %911 = vmatmul.mubr.bf16.gmra.mrb[0].mxu0 %v647
        %v912 = vpop.f32.mrb[0].mxu0
        %v913 = vadd.f32 0.0, %v912
        %v914 = vpop.f32.mrb[0].mxu0
        %v915 = vpop.f32.mrb[0].mxu0
        %v916 = vadd.f32 0.0, %v915
        %v917 = vpop.f32.mrb[0].mxu0
        %918 = vmatprep.mubr.bf16.mxu0 0
        %919 = vmatmul.mubr.bf16.gmra.mrb[0].mxu0 %v648
        %v920 = vpop.f32.mrb[0].mxu0
        %v921 = vadd.f32 0.0, %v920
        %v922 = vpop.f32.mrb[0].mxu0
        %v923 = vpop.f32.mrb[0].mxu0
        %v924 = vadd.f32 0.0, %v923
        %v925 = vpop.f32.mrb[0].mxu0
        %926 = vmatprep.mubr.bf16.mxu0 0
        %927 = vmatmul.mubr.bf16.gmra.mrb[0].mxu0 %v649
        %v928 = vpop.f32.mrb[0].mxu0
        %v929 = vadd.f32 0.0, %v928
        %v930 = vpop.f32.mrb[0].mxu0
        %v931 = vpop.f32.mrb[0].mxu0
        %v932 = vadd.f32 0.0, %v931
        %v933 = vpop.f32.mrb[0].mxu0
        %934 = vmatprep.mubr.bf16.mxu0 0
        %935 = vmatmul.mubr.bf16.gmra.mrb[0].mxu0 %v650
        %v936 = vpop.f32.mrb[0].mxu0
        %v937 = vadd.f32 0.0, %v936
        %v938 = vpop.f32.mrb[0].mxu0
        %v939 = vpop.f32.mrb[0].mxu0
        %v940 = vadd.f32 0.0, %v939
        %v941 = vpop.f32.mrb[0].mxu0
        %942 = vmatprep.mubr.bf16.mxu0 0
        %943 = vmatmul.mubr.bf16.gmra.mrb[0].mxu0 %v651
        %v944 = vpop.f32.mrb[0].mxu0
        %v945 = vadd.f32 0.0, %v944
        %v946 = vpop.f32.mrb[0].mxu0
        %v947 = vpop.f32.mrb[0].mxu0
        %v948 = vadd.f32 0.0, %v947
        %v949 = vpop.f32.mrb[0].mxu0
        %950 = vmatprep.mubr.bf16.mxu0 0
        %951 = vmatmul.mubr.bf16.gmra.mrb[0].mxu0 %v652
        %v952 = vpop.f32.mrb[0].mxu0
        %v953 = vadd.f32 0.0, %v952
        %v954 = vpop.f32.mrb[0].mxu0
        %v955 = vpop.f32.mrb[0].mxu0
        %v956 = vadd.f32 0.0, %v955
        %v957 = vpop.f32.mrb[0].mxu0
        %958 = vmatprep.mubr.bf16.mxu0 0
        %959 = vmatmul.mubr.bf16.gmra.mrb[0].mxu0 %v653
        %v960 = vpop.f32.mrb[0].mxu0
        %v961 = vadd.f32 0.0, %v960
        %v962 = vpop.f32.mrb[0].mxu0
        %v963 = vpop.f32.mrb[0].mxu0
        %v964 = vadd.f32 0.0, %v963
        %v965 = vpop.f32.mrb[0].mxu0
        %966 = vmatprep.mubr.bf16.mxu0 0
        %967 = vmatmul.mubr.bf16.gmra.mrb[0].mxu0 %v654
        %v968 = vpop.f32.mrb[0].mxu0
        %v969 = vadd.f32 0.0, %v968
        %v970 = vpop.f32.mrb[0].mxu0
        %v971 = vpop.f32.mrb[0].mxu0
        %v972 = vadd.f32 0.0, %v971
        %v973 = vpop.f32.mrb[0].mxu0
        %974 = vmatprep.mubr.bf16.mxu0 0
        %975 = vmatmul.mubr.bf16.gmra.mrb[0].mxu0 %v655
        %v976 = vpop.f32.mrb[0].mxu0
        %v977 = vadd.f32 0.0, %v976
        %v978 = vpop.f32.mrb[0].mxu0
        %v979 = vpop.f32.mrb[0].mxu0
        %v980 = vadd.f32 0.0, %v979
        %v981 = vpop.f32.mrb[0].mxu0
        %982 = vmatprep.mubr.bf16.mxu0 0
        %983 = vmatmul.mubr.bf16.gmra.mrb[0].mxu0 %v656
        %v984 = vpop.f32.mrb[0].mxu0
        %v985 = vadd.f32 0.0, %v984
        %v986 = vpop.f32.mrb[0].mxu0
        %v987 = vpop.f32.mrb[0].mxu0
        %v988 = vadd.f32 0.0, %v987
        %v989 = vpop.f32.mrb[0].mxu0
        %990 = vmatprep.mubr.bf16.mxu0 0
        %991 = vmatmul.mubr.bf16.gmra.mrb[0].mxu0 %v657
        %v992 = vpop.f32.mrb[0].mxu0
        %v993 = vadd.f32 0.0, %v992
        %v994 = vpop.f32.mrb[0].mxu0
        %v995 = vpop.f32.mrb[0].mxu0
        %v996 = vadd.f32 0.0, %v995
        %v997 = vpop.f32.mrb[0].mxu0
        %998 = vmatprep.mubr.bf16.mxu0 0
        %999 = vmatmul.mubr.bf16.gmra.mrb[0].mxu0 %v658
        %v1000 = vpop.f32.mrb[0].mxu0
        %v1001 = vadd.f32 0.0, %v1000
        %v1002 = vpop.f32.mrb[0].mxu0
        %v1003 = vpop.f32.mrb[0].mxu0
        %v1004 = vadd.f32 0.0, %v1003
        %v1005 = vpop.f32.mrb[0].mxu0
        %1006 = vmatprep.mubr.bf16.mxu0 0
        %1007 = vmatmul.mubr.bf16.gmra.mrb[0].mxu0 %v659
        %v1008 = vpop.f32.mrb[0].mxu0
        %v1009 = vadd.f32 0.0, %v1008
        %v1010 = vpop.f32.mrb[0].mxu0
        %v1011 = vpop.f32.mrb[0].mxu0
        %v1012 = vadd.f32 0.0, %v1011
        %v1013 = vpop.f32.mrb[0].mxu0
        %1014 = vmatprep.mubr.bf16.mxu0 0
        %1015 = vmatmul.mubr.bf16.gmra.mrb[0].mxu0 %v660
        %v1016 = vpop.f32.mrb[0].mxu0
        %v1017 = vadd.f32 0.0, %v1016
        %v1018 = vpop.f32.mrb[0].mxu0
        %v1019 = vpop.f32.mrb[0].mxu0
        %v1020 = vadd.f32 0.0, %v1019
        %v1021 = vpop.f32.mrb[0].mxu0
        %1022 = vmatprep.mubr.bf16.mxu0 0
        %1023 = vmatmul.mubr.bf16.gmra.mrb[0].mxu0 %v661
        %v1024 = vpop.f32.mrb[0].mxu0
        %v1025 = vadd.f32 0.0, %v1024
        %v1026 = vpop.f32.mrb[0].mxu0
        %v1027 = vpop.f32.mrb[0].mxu0
        %v1028 = vadd.f32 0.0, %v1027
        %v1029 = vpop.f32.mrb[0].mxu0
        %1030 = vdwg.mxu0
        %v1031 = vpack.c.bf16 %v780, %v777
        %v1032 = vpack.c.bf16 %v788, %v785
        %v1033 = vpack.c.bf16 %v796, %v793
        %v1034 = vpack.c.bf16 %v804, %v801
        %v1035 = vpack.c.bf16 %v812, %v809
        %v1036 = vpack.c.bf16 %v820, %v817
        %v1037 = vpack.c.bf16 %v828, %v825
        %v1038 = vpack.c.bf16 %v836, %v833
        %v1039 = vpack.c.bf16 %v844, %v841
        %v1040 = vpack.c.bf16 %v852, %v849
        %v1041 = vpack.c.bf16 %v860, %v857
        %v1042 = vpack.c.bf16 %v868, %v865
        %v1043 = vpack.c.bf16 %v876, %v873
        %v1044 = vpack.c.bf16 %v884, %v881
        %v1045 = vpack.c.bf16 %v892, %v889
        %v1046 = vpack.c.bf16 %v900, %v897
        %v1047 = vpack.c.bf16 %v908, %v905
        %v1048 = vpack.c.bf16 %v916, %v913
        %v1049 = vpack.c.bf16 %v924, %v921
        %v1050 = vpack.c.bf16 %v932, %v929
        %v1051 = vpack.c.bf16 %v940, %v937
        %v1052 = vpack.c.bf16 %v948, %v945
        %v1053 = vpack.c.bf16 %v956, %v953
        %v1054 = vpack.c.bf16 %v964, %v961
        %v1055 = vpack.c.bf16 %v972, %v969
        %v1056 = vpack.c.bf16 %v980, %v977
        %v1057 = vpack.c.bf16 %v988, %v985
        %v1058 = vpack.c.bf16 %v996, %v993
        %v1059 = vpack.c.bf16 %v1004, %v1001
        %v1060 = vpack.c.bf16 %v1012, %v1009
        %v1061 = vpack.c.bf16 %v1020, %v1017
        %v1062 = vpack.c.bf16 %v1028, %v1025
        %v1063 = vld [vmem:[%s373] sm:$0xff]
        %v1064 = vld [vmem:[%s373 + $0x8] sm:$0xff]
        %v1065 = vld [vmem:[%s373 + $0x10] sm:$0xff]
        %v1066 = vld [vmem:[%s373 + $0x18] sm:$0xff]
        %v1067 = vld [vmem:[%s373 + $0x20] sm:$0xff]
        %v1068 = vld [vmem:[%s373 + $0x28] sm:$0xff]
        %v1069 = vld [vmem:[%s373 + $0x30] sm:$0xff]
        %v1070 = vld [vmem:[%s373 + $0x38] sm:$0xff]
        %v1071 = vld [vmem:[%s373 + $0x40] sm:$0xff]
        %v1072 = vld [vmem:[%s373 + $0x48] sm:$0xff]
        %v1073 = vld [vmem:[%s373 + $0x50] sm:$0xff]
        %v1074 = vld [vmem:[%s373 + $0x58] sm:$0xff]
        %v1075 = vld [vmem:[%s373 + $0x60] sm:$0xff]
        %v1076 = vld [vmem:[%s373 + $0x68] sm:$0xff]
        %v1077 = vld [vmem:[%s373 + $0x70] sm:$0xff]
        %v1078 = vld [vmem:[%s373 + $0x78] sm:$0xff]
        %v1079 = vld [vmem:[%s373 + $0x80] sm:$0xff]
        %v1080 = vld [vmem:[%s373 + $0x88] sm:$0xff]
        %v1081 = vld [vmem:[%s373 + $0x90] sm:$0xff]
        %v1082 = vld [vmem:[%s373 + $0x98] sm:$0xff]
        %v1083 = vld [vmem:[%s373 + $0xa0] sm:$0xff]
        %v1084 = vld [vmem:[%s373 + $0xa8] sm:$0xff]
        %v1085 = vld [vmem:[%s373 + $0xb0] sm:$0xff]
        %v1086 = vld [vmem:[%s373 + $0xb8] sm:$0xff]
        %v1087 = vld [vmem:[%s373 + $0xc0] sm:$0xff]
        %v1088 = vld [vmem:[%s373 + $0xc8] sm:$0xff]
        %v1089 = vld [vmem:[%s373 + $0xd0] sm:$0xff]
        %v1090 = vld [vmem:[%s373 + $0xd8] sm:$0xff]
        %v1091 = vld [vmem:[%s373 + $0xe0] sm:$0xff]
        %v1092 = vld [vmem:[%s373 + $0xe8] sm:$0xff]
        %v1093 = vld [vmem:[%s373 + $0xf0] sm:$0xff]
        %v1094 = vld [vmem:[%s373 + $0xf8] sm:$0xff]
        %v1095 = vunpack.c.l.s8.bf16 %v1063
        %v1096 = vunpack.c.l.s8.bf16 %v1064
        %v1097 = vunpack.c.l.s8.bf16 %v1065
        %v1098 = vunpack.c.l.s8.bf16 %v1066
        %v1099 = vunpack.c.h.s8.bf16 %v1063
        %v1100 = vunpack.c.h.s8.bf16 %v1064
        %v1101 = vunpack.c.h.s8.bf16 %v1065
        %v1102 = vunpack.c.h.s8.bf16 %v1066
        %v1103 = vunpack.c.l.s8.bf16 %v1067
        %v1104 = vunpack.c.l.s8.bf16 %v1068
        %v1105 = vunpack.c.l.s8.bf16 %v1069
        %v1106 = vunpack.c.l.s8.bf16 %v1070
        %v1107 = vunpack.c.h.s8.bf16 %v1067
        %v1108 = vunpack.c.h.s8.bf16 %v1068
        %v1109 = vunpack.c.h.s8.bf16 %v1069
        %v1110 = vunpack.c.h.s8.bf16 %v1070
        %v1111 = vunpack.c.l.s8.bf16 %v1071
        %v1112 = vunpack.c.l.s8.bf16 %v1072
        %v1113 = vunpack.c.l.s8.bf16 %v1073
        %v1114 = vunpack.c.l.s8.bf16 %v1074
        %v1115 = vunpack.c.h.s8.bf16 %v1071
        %v1116 = vunpack.c.h.s8.bf16 %v1072
        %v1117 = vunpack.c.h.s8.bf16 %v1073
        %v1118 = vunpack.c.h.s8.bf16 %v1074
        %v1119 = vunpack.c.l.s8.bf16 %v1075
        %v1120 = vunpack.c.l.s8.bf16 %v1076
        %v1121 = vunpack.c.l.s8.bf16 %v1077
        %v1122 = vunpack.c.l.s8.bf16 %v1078
        %v1123 = vunpack.c.h.s8.bf16 %v1075
        %v1124 = vunpack.c.h.s8.bf16 %v1076
        %v1125 = vunpack.c.h.s8.bf16 %v1077
        %v1126 = vunpack.c.h.s8.bf16 %v1078
        %v1127 = vunpack.c.l.s8.bf16 %v1079
        %v1128 = vunpack.c.l.s8.bf16 %v1080
        %v1129 = vunpack.c.l.s8.bf16 %v1081
        %v1130 = vunpack.c.l.s8.bf16 %v1082
        %v1131 = vunpack.c.h.s8.bf16 %v1079
        %v1132 = vunpack.c.h.s8.bf16 %v1080
        %v1133 = vunpack.c.h.s8.bf16 %v1081
        %v1134 = vunpack.c.h.s8.bf16 %v1082
        %v1135 = vunpack.c.l.s8.bf16 %v1083
        %v1136 = vunpack.c.l.s8.bf16 %v1084
        %v1137 = vunpack.c.l.s8.bf16 %v1085
        %v1138 = vunpack.c.l.s8.bf16 %v1086
        %v1139 = vunpack.c.h.s8.bf16 %v1083
        %v1140 = vunpack.c.h.s8.bf16 %v1084
        %v1141 = vunpack.c.h.s8.bf16 %v1085
        %v1142 = vunpack.c.h.s8.bf16 %v1086
        %v1143 = vunpack.c.l.s8.bf16 %v1087
        %v1144 = vunpack.c.l.s8.bf16 %v1088
        %v1145 = vunpack.c.l.s8.bf16 %v1089
        %v1146 = vunpack.c.l.s8.bf16 %v1090
        %v1147 = vunpack.c.h.s8.bf16 %v1087
        %v1148 = vunpack.c.h.s8.bf16 %v1088
        %v1149 = vunpack.c.h.s8.bf16 %v1089
        %v1150 = vunpack.c.h.s8.bf16 %v1090
        %v1151 = vunpack.c.l.s8.bf16 %v1091
        %v1152 = vunpack.c.l.s8.bf16 %v1092
        %v1153 = vunpack.c.l.s8.bf16 %v1093
        %v1154 = vunpack.c.l.s8.bf16 %v1094
        %v1155 = vunpack.c.h.s8.bf16 %v1091
        %v1156 = vunpack.c.h.s8.bf16 %v1092
        %v1157 = vunpack.c.h.s8.bf16 %v1093
        %v1158 = vunpack.c.h.s8.bf16 %v1094
        %v1159 = vld [vmem:[#allocation2] sm:$0xff]
        %v1160 = vld [vmem:[#allocation2 + $0x8] sm:$0xff]
        %v1161 = vld [vmem:[#allocation2 + $0x10] sm:$0xff]
        %v1162 = vld [vmem:[#allocation2 + $0x18] sm:$0xff]
        %v1163 = vld [vmem:[#allocation2 + $0x20] sm:$0xff]
        %v1164 = vld [vmem:[#allocation2 + $0x28] sm:$0xff]
        %v1165 = vld [vmem:[#allocation2 + $0x30] sm:$0xff]
        %v1166 = vld [vmem:[#allocation2 + $0x38] sm:$0xff]
        %v1167 = vld [vmem:[#allocation2 + $0x40] sm:$0xff]
        %v1168 = vld [vmem:[#allocation2 + $0x48] sm:$0xff]
        %v1169 = vld [vmem:[#allocation2 + $0x50] sm:$0xff]
        %v1170 = vld [vmem:[#allocation2 + $0x58] sm:$0xff]
        %v1171 = vld [vmem:[#allocation2 + $0x60] sm:$0xff]
        %v1172 = vld [vmem:[#allocation2 + $0x68] sm:$0xff]
        %v1173 = vld [vmem:[#allocation2 + $0x70] sm:$0xff]
        %v1174 = vld [vmem:[#allocation2 + $0x78] sm:$0xff]
        %v1175 = vld [vmem:[#allocation2 + $0x80] sm:$0xff]
        %v1176 = vld [vmem:[#allocation2 + $0x88] sm:$0xff]
        %v1177 = vld [vmem:[#allocation2 + $0x90] sm:$0xff]
        %v1178 = vld [vmem:[#allocation2 + $0x98] sm:$0xff]
        %v1179 = vld [vmem:[#allocation2 + $0xa0] sm:$0xff]
        %v1180 = vld [vmem:[#allocation2 + $0xa8] sm:$0xff]
        %v1181 = vld [vmem:[#allocation2 + $0xb0] sm:$0xff]
        %v1182 = vld [vmem:[#allocation2 + $0xb8] sm:$0xff]
        %v1183 = vld [vmem:[#allocation2 + $0xc0] sm:$0xff]
        %v1184 = vld [vmem:[#allocation2 + $0xc8] sm:$0xff]
        %v1185 = vld [vmem:[#allocation2 + $0xd0] sm:$0xff]
        %v1186 = vld [vmem:[#allocation2 + $0xd8] sm:$0xff]
        %v1187 = vld [vmem:[#allocation2 + $0xe0] sm:$0xff]
        %v1188 = vld [vmem:[#allocation2 + $0xe8] sm:$0xff]
        %v1189 = vld [vmem:[#allocation2 + $0xf0] sm:$0xff]
        %v1190 = vld [vmem:[#allocation2 + $0xf8] sm:$0xff]
        %1191 = vmatprep.subr.bf16.mxu0 0
        %1192 = vmatpush1.bf16.msra.mxu0 %v1031
        %1193 = vmatprep.subr.bf16.mxu0 0
        %1194 = vmatpush1.bf16.msra.mxu0 %v1032
        %1195 = vmatprep.subr.bf16.mxu0 0
        %1196 = vmatpush1.bf16.msra.mxu0 %v1033
        %1197 = vmatprep.subr.bf16.mxu0 0
        %1198 = vmatpush1.bf16.msra.mxu0 %v1034
        %1199 = vmatprep.subr.bf16.mxu0 0
        %1200 = vmatpush1.bf16.msra.mxu0 %v1035
        %1201 = vmatprep.subr.bf16.mxu0 0
        %1202 = vmatpush1.bf16.msra.mxu0 %v1036
        %1203 = vmatprep.subr.bf16.mxu0 0
        %1204 = vmatpush1.bf16.msra.mxu0 %v1037
        %1205 = vmatprep.subr.bf16.mxu0 0
        %1206 = vmatpush1.bf16.msra.mxu0 %v1038
        %1207 = vmatprep.subr.bf16.mxu0 0
        %1208 = vmatpush1.bf16.msra.mxu0 %v1039
        %1209 = vmatprep.subr.bf16.mxu0 0
        %1210 = vmatpush1.bf16.msra.mxu0 %v1040
        %1211 = vmatprep.subr.bf16.mxu0 0
        %1212 = vmatpush1.bf16.msra.mxu0 %v1041
        %1213 = vmatprep.subr.bf16.mxu0 0
        %1214 = vmatpush1.bf16.msra.mxu0 %v1042
        %1215 = vmatprep.subr.bf16.mxu0 0
        %1216 = vmatpush1.bf16.msra.mxu0 %v1043
        %1217 = vmatprep.subr.bf16.mxu0 0
        %1218 = vmatpush1.bf16.msra.mxu0 %v1044
        %1219 = vmatprep.subr.bf16.mxu0 0
        %1220 = vmatpush1.bf16.msra.mxu0 %v1045
        %1221 = vmatprep.subr.bf16.mxu0 0
        %1222 = vmatpush1.bf16.msra.mxu0 %v1046
        %1223 = vmatprep.mubr.bf16.mxu0 %v1096
        %1224 = vmatmul.mubr.bf16.gmra.mrb[0].mxu0 %v1095
        %v1225 = vpop.f32.mrb[0].mxu0
        %v1226 = vadd.f32 0.0, %v1225
        %v1227 = vpop.f32.mrb[0].mxu0
        %v1228 = vpop.f32.mrb[0].mxu0
        %v1229 = vadd.f32 0.0, %v1228
        %v1230 = vpop.f32.mrb[0].mxu0
        %1231 = vmatprep.mubr.bf16.mxu0 %v1100
        %1232 = vmatmul.mubr.bf16.gmra.mrb[0].mxu0 %v1099
        %v1233 = vpop.f32.mrb[0].mxu0
        %v1234 = vadd.f32 0.0, %v1233
        %v1235 = vpop.f32.mrb[0].mxu0
        %v1236 = vpop.f32.mrb[0].mxu0
        %v1237 = vadd.f32 0.0, %v1236
        %v1238 = vpop.f32.mrb[0].mxu0
        %1239 = vmatprep.mubr.bf16.mxu0 %v1104
        %1240 = vmatmul.mubr.bf16.gmra.mrb[0].mxu0 %v1103
        %v1241 = vpop.f32.mrb[0].mxu0
        %v1242 = vadd.f32 0.0, %v1241
        %v1243 = vpop.f32.mrb[0].mxu0
        %v1244 = vpop.f32.mrb[0].mxu0
        %v1245 = vadd.f32 0.0, %v1244
        %v1246 = vpop.f32.mrb[0].mxu0
        %1247 = vmatprep.mubr.bf16.mxu0 %v1108
        %1248 = vmatmul.mubr.bf16.gmra.mrb[0].mxu0 %v1107
        %v1249 = vpop.f32.mrb[0].mxu0
        %v1250 = vadd.f32 0.0, %v1249
        %v1251 = vpop.f32.mrb[0].mxu0
        %v1252 = vpop.f32.mrb[0].mxu0
        %v1253 = vadd.f32 0.0, %v1252
        %v1254 = vpop.f32.mrb[0].mxu0
        %1255 = vmatprep.mubr.bf16.mxu0 %v1112
        %1256 = vmatmul.mubr.bf16.gmra.mrb[0].mxu0 %v1111
        %v1257 = vpop.f32.mrb[0].mxu0
        %v1258 = vadd.f32 0.0, %v1257
        %v1259 = vpop.f32.mrb[0].mxu0
        %v1260 = vpop.f32.mrb[0].mxu0
        %v1261 = vadd.f32 0.0, %v1260
        %v1262 = vpop.f32.mrb[0].mxu0
        %1263 = vmatprep.mubr.bf16.mxu0 %v1116
        %1264 = vmatmul.mubr.bf16.gmra.mrb[0].mxu0 %v1115
        %v1265 = vpop.f32.mrb[0].mxu0
        %v1266 = vadd.f32 0.0, %v1265
        %v1267 = vpop.f32.mrb[0].mxu0
        %v1268 = vpop.f32.mrb[0].mxu0
        %v1269 = vadd.f32 0.0, %v1268
        %v1270 = vpop.f32.mrb[0].mxu0
        %1271 = vmatprep.mubr.bf16.mxu0 %v1120
        %1272 = vmatmul.mubr.bf16.gmra.mrb[0].mxu0 %v1119
        %v1273 = vpop.f32.mrb[0].mxu0
        %v1274 = vadd.f32 0.0, %v1273
        %v1275 = vpop.f32.mrb[0].mxu0
        %v1276 = vpop.f32.mrb[0].mxu0
        %v1277 = vadd.f32 0.0, %v1276
        %v1278 = vpop.f32.mrb[0].mxu0
        %1279 = vmatprep.mubr.bf16.mxu0 %v1124
        %1280 = vmatmul.mubr.bf16.gmra.mrb[0].mxu0 %v1123
        %v1281 = vpop.f32.mrb[0].mxu0
        %v1282 = vadd.f32 0.0, %v1281
        %v1283 = vpop.f32.mrb[0].mxu0
        %v1284 = vpop.f32.mrb[0].mxu0
        %v1285 = vadd.f32 0.0, %v1284
        %v1286 = vpop.f32.mrb[0].mxu0
        %1287 = vmatprep.mubr.bf16.mxu0 %v1128
        %1288 = vmatmul.mubr.bf16.gmra.mrb[0].mxu0 %v1127
        %v1289 = vpop.f32.mrb[0].mxu0
        %v1290 = vadd.f32 0.0, %v1289
        %v1291 = vpop.f32.mrb[0].mxu0
        %v1292 = vpop.f32.mrb[0].mxu0
        %v1293 = vadd.f32 0.0, %v1292
        %v1294 = vpop.f32.mrb[0].mxu0
        %1295 = vmatprep.mubr.bf16.mxu0 %v1132
        %1296 = vmatmul.mubr.bf16.gmra.mrb[0].mxu0 %v1131
        %v1297 = vpop.f32.mrb[0].mxu0
        %v1298 = vadd.f32 0.0, %v1297
        %v1299 = vpop.f32.mrb[0].mxu0
        %v1300 = vpop.f32.mrb[0].mxu0
        %v1301 = vadd.f32 0.0, %v1300
        %v1302 = vpop.f32.mrb[0].mxu0
        %1303 = vmatprep.mubr.bf16.mxu0 %v1136
        %1304 = vmatmul.mubr.bf16.gmra.mrb[0].mxu0 %v1135
        %v1305 = vpop.f32.mrb[0].mxu0
        %v1306 = vadd.f32 0.0, %v1305
        %v1307 = vpop.f32.mrb[0].mxu0
        %v1308 = vpop.f32.mrb[0].mxu0
        %v1309 = vadd.f32 0.0, %v1308
        %v1310 = vpop.f32.mrb[0].mxu0
        %1311 = vmatprep.mubr.bf16.mxu0 %v1140
        %1312 = vmatmul.mubr.bf16.gmra.mrb[0].mxu0 %v1139
        %v1313 = vpop.f32.mrb[0].mxu0
        %v1314 = vadd.f32 0.0, %v1313
        %v1315 = vpop.f32.mrb[0].mxu0
        %v1316 = vpop.f32.mrb[0].mxu0
        %v1317 = vadd.f32 0.0, %v1316
        %v1318 = vpop.f32.mrb[0].mxu0
        %1319 = vmatprep.mubr.bf16.mxu0 %v1144
        %1320 = vmatmul.mubr.bf16.gmra.mrb[0].mxu0 %v1143
        %v1321 = vpop.f32.mrb[0].mxu0
        %v1322 = vadd.f32 0.0, %v1321
        %v1323 = vpop.f32.mrb[0].mxu0
        %v1324 = vpop.f32.mrb[0].mxu0
        %v1325 = vadd.f32 0.0, %v1324
        %v1326 = vpop.f32.mrb[0].mxu0
        %1327 = vmatprep.mubr.bf16.mxu0 %v1148
        %1328 = vmatmul.mubr.bf16.gmra.mrb[0].mxu0 %v1147
        %v1329 = vpop.f32.mrb[0].mxu0
        %v1330 = vadd.f32 0.0, %v1329
        %v1331 = vpop.f32.mrb[0].mxu0
        %v1332 = vpop.f32.mrb[0].mxu0
        %v1333 = vadd.f32 0.0, %v1332
        %v1334 = vpop.f32.mrb[0].mxu0
        %1335 = vmatprep.mubr.bf16.mxu0 %v1152
        %1336 = vmatmul.mubr.bf16.gmra.mrb[0].mxu0 %v1151
        %v1337 = vpop.f32.mrb[0].mxu0
        %v1338 = vadd.f32 0.0, %v1337
        %v1339 = vpop.f32.mrb[0].mxu0
        %v1340 = vpop.f32.mrb[0].mxu0
        %v1341 = vadd.f32 0.0, %v1340
        %v1342 = vpop.f32.mrb[0].mxu0
        %1343 = vmatprep.mubr.bf16.mxu0 %v1156
        %1344 = vmatmul.mubr.bf16.gmra.mrb[0].mxu0 %v1155
        %v1345 = vpop.f32.mrb[0].mxu0
        %v1346 = vadd.f32 0.0, %v1345
        %v1347 = vpop.f32.mrb[0].mxu0
        %v1348 = vpop.f32.mrb[0].mxu0
        %v1349 = vadd.f32 0.0, %v1348
        %v1350 = vpop.f32.mrb[0].mxu0
        %1351 = vdwg.mxu0
        %1352 = vmatprep.subr.bf16.mxu0 0
        %1353 = vmatpush1.bf16.msra.mxu0 %v1047
        %1354 = vmatprep.subr.bf16.mxu0 0
        %1355 = vmatpush1.bf16.msra.mxu0 %v1048
        %1356 = vmatprep.subr.bf16.mxu0 0
        %1357 = vmatpush1.bf16.msra.mxu0 %v1049
        %1358 = vmatprep.subr.bf16.mxu0 0
        %1359 = vmatpush1.bf16.msra.mxu0 %v1050
        %1360 = vmatprep.subr.bf16.mxu0 0
        %1361 = vmatpush1.bf16.msra.mxu0 %v1051
        %1362 = vmatprep.subr.bf16.mxu0 0
        %1363 = vmatpush1.bf16.msra.mxu0 %v1052
        %1364 = vmatprep.subr.bf16.mxu0 0
        %1365 = vmatpush1.bf16.msra.mxu0 %v1053
        %1366 = vmatprep.subr.bf16.mxu0 0
        %1367 = vmatpush1.bf16.msra.mxu0 %v1054
        %1368 = vmatprep.subr.bf16.mxu0 0
        %1369 = vmatpush1.bf16.msra.mxu0 %v1055
        %1370 = vmatprep.subr.bf16.mxu0 0
        %1371 = vmatpush1.bf16.msra.mxu0 %v1056
        %1372 = vmatprep.subr.bf16.mxu0 0
        %1373 = vmatpush1.bf16.msra.mxu0 %v1057
        %1374 = vmatprep.subr.bf16.mxu0 0
        %1375 = vmatpush1.bf16.msra.mxu0 %v1058
        %1376 = vmatprep.subr.bf16.mxu0 0
        %1377 = vmatpush1.bf16.msra.mxu0 %v1059
        %1378 = vmatprep.subr.bf16.mxu0 0
        %1379 = vmatpush1.bf16.msra.mxu0 %v1060
        %1380 = vmatprep.subr.bf16.mxu0 0
        %1381 = vmatpush1.bf16.msra.mxu0 %v1061
        %1382 = vmatprep.subr.bf16.mxu0 0
        %1383 = vmatpush1.bf16.msra.mxu0 %v1062
        %1384 = vmatprep.mubr.bf16.mxu0 %v1098
        %1385 = vmatmul.mubr.bf16.gmra.mrb[0].mxu0 %v1097
        %v1386 = vpop.f32.mrb[0].mxu0
        %v1387 = vadd.f32 %v1226, %v1386
        %v1388 = vpop.f32.mrb[0].mxu0
        %v1389 = vpop.f32.mrb[0].mxu0
        %v1390 = vadd.f32 %v1229, %v1389
        %v1391 = vpop.f32.mrb[0].mxu0
        %1392 = vmatprep.mubr.bf16.mxu0 %v1102
        %1393 = vmatmul.mubr.bf16.gmra.mrb[0].mxu0 %v1101
        %v1394 = vpop.f32.mrb[0].mxu0
        %v1395 = vadd.f32 %v1234, %v1394
        %v1396 = vpop.f32.mrb[0].mxu0
        %v1397 = vpop.f32.mrb[0].mxu0
        %v1398 = vadd.f32 %v1237, %v1397
        %v1399 = vpop.f32.mrb[0].mxu0
        %1400 = vmatprep.mubr.bf16.mxu0 %v1106
        %1401 = vmatmul.mubr.bf16.gmra.mrb[0].mxu0 %v1105
        %v1402 = vpop.f32.mrb[0].mxu0
        %v1403 = vadd.f32 %v1242, %v1402
        %v1404 = vpop.f32.mrb[0].mxu0
        %v1405 = vpop.f32.mrb[0].mxu0
        %v1406 = vadd.f32 %v1245, %v1405
        %v1407 = vpop.f32.mrb[0].mxu0
        %1408 = vmatprep.mubr.bf16.mxu0 %v1110
        %1409 = vmatmul.mubr.bf16.gmra.mrb[0].mxu0 %v1109
        %v1410 = vpop.f32.mrb[0].mxu0
        %v1411 = vadd.f32 %v1250, %v1410
        %v1412 = vpop.f32.mrb[0].mxu0
        %v1413 = vpop.f32.mrb[0].mxu0
        %v1414 = vadd.f32 %v1253, %v1413
        %v1415 = vpop.f32.mrb[0].mxu0
        %1416 = vmatprep.mubr.bf16.mxu0 %v1114
        %1417 = vmatmul.mubr.bf16.gmra.mrb[0].mxu0 %v1113
        %v1418 = vpop.f32.mrb[0].mxu0
        %v1419 = vadd.f32 %v1258, %v1418
        %v1420 = vpop.f32.mrb[0].mxu0
        %v1421 = vpop.f32.mrb[0].mxu0
        %v1422 = vadd.f32 %v1261, %v1421
        %v1423 = vpop.f32.mrb[0].mxu0
        %1424 = vmatprep.mubr.bf16.mxu0 %v1118
        %1425 = vmatmul.mubr.bf16.gmra.mrb[0].mxu0 %v1117
        %v1426 = vpop.f32.mrb[0].mxu0
        %v1427 = vadd.f32 %v1266, %v1426
        %v1428 = vpop.f32.mrb[0].mxu0
        %v1429 = vpop.f32.mrb[0].mxu0
        %v1430 = vadd.f32 %v1269, %v1429
        %v1431 = vpop.f32.mrb[0].mxu0
        %1432 = vmatprep.mubr.bf16.mxu0 %v1122
        %1433 = vmatmul.mubr.bf16.gmra.mrb[0].mxu0 %v1121
        %v1434 = vpop.f32.mrb[0].mxu0
        %v1435 = vadd.f32 %v1274, %v1434
        %v1436 = vpop.f32.mrb[0].mxu0
        %v1437 = vpop.f32.mrb[0].mxu0
        %v1438 = vadd.f32 %v1277, %v1437
        %v1439 = vpop.f32.mrb[0].mxu0
        %1440 = vmatprep.mubr.bf16.mxu0 %v1126
        %1441 = vmatmul.mubr.bf16.gmra.mrb[0].mxu0 %v1125
        %v1442 = vpop.f32.mrb[0].mxu0
        %v1443 = vadd.f32 %v1282, %v1442
        %v1444 = vpop.f32.mrb[0].mxu0
        %v1445 = vpop.f32.mrb[0].mxu0
        %v1446 = vadd.f32 %v1285, %v1445
        %v1447 = vpop.f32.mrb[0].mxu0
        %1448 = vmatprep.mubr.bf16.mxu0 %v1130
        %1449 = vmatmul.mubr.bf16.gmra.mrb[0].mxu0 %v1129
        %v1450 = vpop.f32.mrb[0].mxu0
        %v1451 = vadd.f32 %v1290, %v1450
        %v1452 = vpop.f32.mrb[0].mxu0
        %v1453 = vpop.f32.mrb[0].mxu0
        %v1454 = vadd.f32 %v1293, %v1453
        %v1455 = vpop.f32.mrb[0].mxu0
        %1456 = vmatprep.mubr.bf16.mxu0 %v1134
        %1457 = vmatmul.mubr.bf16.gmra.mrb[0].mxu0 %v1133
        %v1458 = vpop.f32.mrb[0].mxu0
        %v1459 = vadd.f32 %v1298, %v1458
        %v1460 = vpop.f32.mrb[0].mxu0
        %v1461 = vpop.f32.mrb[0].mxu0
        %v1462 = vadd.f32 %v1301, %v1461
        %v1463 = vpop.f32.mrb[0].mxu0
        %1464 = vmatprep.mubr.bf16.mxu0 %v1138
        %1465 = vmatmul.mubr.bf16.gmra.mrb[0].mxu0 %v1137
        %v1466 = vpop.f32.mrb[0].mxu0
        %v1467 = vadd.f32 %v1306, %v1466
        %v1468 = vpop.f32.mrb[0].mxu0
        %v1469 = vpop.f32.mrb[0].mxu0
        %v1470 = vadd.f32 %v1309, %v1469
        %v1471 = vpop.f32.mrb[0].mxu0
        %1472 = vmatprep.mubr.bf16.mxu0 %v1142
        %1473 = vmatmul.mubr.bf16.gmra.mrb[0].mxu0 %v1141
        %v1474 = vpop.f32.mrb[0].mxu0
        %v1475 = vadd.f32 %v1314, %v1474
        %v1476 = vpop.f32.mrb[0].mxu0
        %v1477 = vpop.f32.mrb[0].mxu0
        %v1478 = vadd.f32 %v1317, %v1477
        %v1479 = vpop.f32.mrb[0].mxu0
        %1480 = vmatprep.mubr.bf16.mxu0 %v1146
        %1481 = vmatmul.mubr.bf16.gmra.mrb[0].mxu0 %v1145
        %v1482 = vpop.f32.mrb[0].mxu0
        %v1483 = vadd.f32 %v1322, %v1482
        %v1484 = vpop.f32.mrb[0].mxu0
        %v1485 = vpop.f32.mrb[0].mxu0
        %v1486 = vadd.f32 %v1325, %v1485
        %v1487 = vpop.f32.mrb[0].mxu0
        %1488 = vmatprep.mubr.bf16.mxu0 %v1150
        %1489 = vmatmul.mubr.bf16.gmra.mrb[0].mxu0 %v1149
        %v1490 = vpop.f32.mrb[0].mxu0
        %v1491 = vadd.f32 %v1330, %v1490
        %v1492 = vpop.f32.mrb[0].mxu0
        %v1493 = vpop.f32.mrb[0].mxu0
        %v1494 = vadd.f32 %v1333, %v1493
        %v1495 = vpop.f32.mrb[0].mxu0
        %1496 = vmatprep.mubr.bf16.mxu0 %v1154
        %1497 = vmatmul.mubr.bf16.gmra.mrb[0].mxu0 %v1153
        %v1498 = vpop.f32.mrb[0].mxu0
        %v1499 = vadd.f32 %v1338, %v1498
        %v1500 = vpop.f32.mrb[0].mxu0
        %v1501 = vpop.f32.mrb[0].mxu0
        %v1502 = vadd.f32 %v1341, %v1501
        %v1503 = vpop.f32.mrb[0].mxu0
        %1504 = vmatprep.mubr.bf16.mxu0 %v1158
        %1505 = vmatmul.mubr.bf16.gmra.mrb[0].mxu0 %v1157
        %v1506 = vpop.f32.mrb[0].mxu0
        %v1507 = vadd.f32 %v1346, %v1506
        %v1508 = vpop.f32.mrb[0].mxu0
        %v1509 = vpop.f32.mrb[0].mxu0
        %v1510 = vadd.f32 %v1349, %v1509
        %v1511 = vpop.f32.mrb[0].mxu0
        %1512 = vdwg.mxu0
        %v1513 = vadd.f32 %v1159, %v1387
        %v1514 = vadd.f32 %v1160, %v1390
        %v1515 = vadd.f32 %v1161, %v1395
        %v1516 = vadd.f32 %v1162, %v1398
        %v1517 = vadd.f32 %v1163, %v1403
        %v1518 = vadd.f32 %v1164, %v1406
        %v1519 = vadd.f32 %v1165, %v1411
        %v1520 = vadd.f32 %v1166, %v1414
        %v1521 = vadd.f32 %v1167, %v1419
        %v1522 = vadd.f32 %v1168, %v1422
        %v1523 = vadd.f32 %v1169, %v1427
        %v1524 = vadd.f32 %v1170, %v1430
        %v1525 = vadd.f32 %v1171, %v1435
        %v1526 = vadd.f32 %v1172, %v1438
        %v1527 = vadd.f32 %v1173, %v1443
        %v1528 = vadd.f32 %v1174, %v1446
        %v1529 = vadd.f32 %v1175, %v1451
        %v1530 = vadd.f32 %v1176, %v1454
        %v1531 = vadd.f32 %v1177, %v1459
        %v1532 = vadd.f32 %v1178, %v1462
        %v1533 = vadd.f32 %v1179, %v1467
        %v1534 = vadd.f32 %v1180, %v1470
        %v1535 = vadd.f32 %v1181, %v1475
        %v1536 = vadd.f32 %v1182, %v1478
        %v1537 = vadd.f32 %v1183, %v1483
        %v1538 = vadd.f32 %v1184, %v1486
        %v1539 = vadd.f32 %v1185, %v1491
        %v1540 = vadd.f32 %v1186, %v1494
        %v1541 = vadd.f32 %v1187, %v1499
        %v1542 = vadd.f32 %v1188, %v1502
        %v1543 = vadd.f32 %v1189, %v1507
        %v1544 = vadd.f32 %v1190, %v1510
        %1545 = vst [vmem:[#allocation2] sm:$0xff] %v1513
        %1546 = vst [vmem:[#allocation2 + $0x8] sm:$0xff] %v1514
        %1547 = vst [vmem:[#allocation2 + $0x10] sm:$0xff] %v1515
        %1548 = vst [vmem:[#allocation2 + $0x18] sm:$0xff] %v1516
        %1549 = vst [vmem:[#allocation2 + $0x20] sm:$0xff] %v1517
        %1550 = vst [vmem:[#allocation2 + $0x28] sm:$0xff] %v1518
        %1551 = vst [vmem:[#allocation2 + $0x30] sm:$0xff] %v1519
        %1552 = vst [vmem:[#allocation2 + $0x38] sm:$0xff] %v1520
        %1553 = vst [vmem:[#allocation2 + $0x40] sm:$0xff] %v1521
        %1554 = vst [vmem:[#allocation2 + $0x48] sm:$0xff] %v1522
        %1555 = vst [vmem:[#allocation2 + $0x50] sm:$0xff] %v1523
        %1556 = vst [vmem:[#allocation2 + $0x58] sm:$0xff] %v1524
        %1557 = vst [vmem:[#allocation2 + $0x60] sm:$0xff] %v1525
        %1558 = vst [vmem:[#allocation2 + $0x68] sm:$0xff] %v1526
        %1559 = vst [vmem:[#allocation2 + $0x70] sm:$0xff] %v1527
        %1560 = vst [vmem:[#allocation2 + $0x78] sm:$0xff] %v1528
        %1561 = vst [vmem:[#allocation2 + $0x80] sm:$0xff] %v1529
        %1562 = vst [vmem:[#allocation2 + $0x88] sm:$0xff] %v1530
        %1563 = vst [vmem:[#allocation2 + $0x90] sm:$0xff] %v1531
        %1564 = vst [vmem:[#allocation2 + $0x98] sm:$0xff] %v1532
        %1565 = vst [vmem:[#allocation2 + $0xa0] sm:$0xff] %v1533
        %1566 = vst [vmem:[#allocation2 + $0xa8] sm:$0xff] %v1534
        %1567 = vst [vmem:[#allocation2 + $0xb0] sm:$0xff] %v1535
        %1568 = vst [vmem:[#allocation2 + $0xb8] sm:$0xff] %v1536
        %1569 = vst [vmem:[#allocation2 + $0xc0] sm:$0xff] %v1537
        %1570 = vst [vmem:[#allocation2 + $0xc8] sm:$0xff] %v1538
        %1571 = vst [vmem:[#allocation2 + $0xd0] sm:$0xff] %v1539
        %1572 = vst [vmem:[#allocation2 + $0xd8] sm:$0xff] %v1540
        %1573 = vst [vmem:[#allocation2 + $0xe0] sm:$0xff] %v1541
        %1574 = vst [vmem:[#allocation2 + $0xe8] sm:$0xff] %v1542
        %1575 = vst [vmem:[#allocation2 + $0xf0] sm:$0xff] %v1543
        %1576 = vst [vmem:[#allocation2 + $0xf8] sm:$0xff] %v1544
        // Predicated region
        $region61: #{tpu_custom_call.1} parent=43 // pred_check
          %p1577 = pneg %p386
        $region62: #{tpu_custom_call.1} parent=43 // pred_check_branch
          %1579 = sbr.rel (%p1577) target = $region64
        $region63: #{tpu_custom_call.1} parent=43 // pred_region
          %v1580 = vld [vmem:[%s316] sm:$0xf]
          %v1581 = vld [vmem:[%s316 + $0x4] sm:$0xf]
          %v1582 = vld [vmem:[%s316 + $0x8] sm:$0xf]
          %v1583 = vld [vmem:[%s316 + $0xc] sm:$0xf]
          %v1584 = vld [vmem:[%s316 + $0x10] sm:$0xf]
          %v1585 = vld [vmem:[%s316 + $0x14] sm:$0xf]
          %v1586 = vld [vmem:[%s316 + $0x18] sm:$0xf]
          %v1587 = vld [vmem:[%s316 + $0x1c] sm:$0xf]
          %v1588 = vld [vmem:[%s316 + $0x20] sm:$0xf]
          %v1589 = vld [vmem:[%s316 + $0x24] sm:$0xf]
          %v1590 = vld [vmem:[%s316 + $0x28] sm:$0xf]
          %v1591 = vld [vmem:[%s316 + $0x2c] sm:$0xf]
          %v1592 = vld [vmem:[%s316 + $0x30] sm:$0xf]
          %v1593 = vld [vmem:[%s316 + $0x34] sm:$0xf]
          %v1594 = vld [vmem:[%s316 + $0x38] sm:$0xf]
          %v1595 = vld [vmem:[%s316 + $0x3c] sm:$0xf]
          %v1596 = vld [vmem:[%s316 + $0x40] sm:$0xf]
          %v1597 = vld [vmem:[%s316 + $0x44] sm:$0xf]
          %v1598 = vld [vmem:[%s316 + $0x48] sm:$0xf]
          %v1599 = vld [vmem:[%s316 + $0x4c] sm:$0xf]
          %v1600 = vld [vmem:[%s316 + $0x50] sm:$0xf]
          %v1601 = vld [vmem:[%s316 + $0x54] sm:$0xf]
          %v1602 = vld [vmem:[%s316 + $0x58] sm:$0xf]
          %v1603 = vld [vmem:[%s316 + $0x5c] sm:$0xf]
          %v1604 = vld [vmem:[%s316 + $0x60] sm:$0xf]
          %v1605 = vld [vmem:[%s316 + $0x64] sm:$0xf]
          %v1606 = vld [vmem:[%s316 + $0x68] sm:$0xf]
          %v1607 = vld [vmem:[%s316 + $0x6c] sm:$0xf]
          %v1608 = vld [vmem:[%s316 + $0x70] sm:$0xf]
          %v1609 = vld [vmem:[%s316 + $0x74] sm:$0xf]
          %v1610 = vld [vmem:[%s316 + $0x78] sm:$0xf]
          %v1611 = vld [vmem:[%s316 + $0x7c] sm:$0xf]
          %v1612 = vld [vmem:[#allocation8 + $0x4] sm:$0xf]
          %v1613 = vld [vmem:[#allocation8 + $0xc] sm:$0xf]
          %v1614 = vld [vmem:[#allocation8 + $0x14] sm:$0xf]
          %v1615 = vld [vmem:[#allocation8 + $0x1c] sm:$0xf]
          %v1616 = vld [vmem:[#allocation8 + $0x24] sm:$0xf]
          %v1617 = vld [vmem:[#allocation8 + $0x2c] sm:$0xf]
          %v1618 = vld [vmem:[#allocation8 + $0x34] sm:$0xf]
          %v1619 = vld [vmem:[#allocation8 + $0x3c] sm:$0xf]
          %v1620 = vld [vmem:[#allocation8 + $0x44] sm:$0xf]
          %v1621 = vld [vmem:[#allocation8 + $0x4c] sm:$0xf]
          %v1622 = vld [vmem:[#allocation8 + $0x54] sm:$0xf]
          %v1623 = vld [vmem:[#allocation8 + $0x5c] sm:$0xf]
          %v1624 = vld [vmem:[#allocation8 + $0x64] sm:$0xf]
          %v1625 = vld [vmem:[#allocation8 + $0x6c] sm:$0xf]
          %v1626 = vld [vmem:[#allocation8 + $0x74] sm:$0xf]
          %v1627 = vld [vmem:[#allocation8 + $0x7c] sm:$0xf]
          %v1628 = vld [vmem:[%s4] sm:$0x1]
          %v1630 = vlaneseq
          %v1631 = vshrl.u32 %v1630, 7
          %v1632 = vsub.s32 0, %v1631
          %v1633 = vrot.slane %v1628, %v1632
          %v1667 = vunpack.c.l.b16 %v1580
          %v1668 = vunpack.c.l.b16 %v1581
          %v1669 = vunpack.c.l.b16 %v1582
          %v1670 = vunpack.c.l.b16 %v1583
          %v1671 = vunpack.c.l.b16 %v1584
          %v1672 = vunpack.c.l.b16 %v1585
          %v1673 = vunpack.c.l.b16 %v1586
          %v1674 = vunpack.c.l.b16 %v1587
          %v1675 = vunpack.c.l.b16 %v1588
          %v1676 = vunpack.c.l.b16 %v1589
          %v1677 = vunpack.c.l.b16 %v1590
          %v1678 = vunpack.c.l.b16 %v1591
          %v1679 = vunpack.c.l.b16 %v1592
          %v1680 = vunpack.c.l.b16 %v1593
          %v1681 = vunpack.c.l.b16 %v1594
          %v1682 = vunpack.c.l.b16 %v1595
          %v1683 = vunpack.c.l.b16 %v1596
          %v1684 = vunpack.c.l.b16 %v1597
          %v1685 = vunpack.c.l.b16 %v1598
          %v1686 = vunpack.c.l.b16 %v1599
          %v1687 = vunpack.c.l.b16 %v1600
          %v1688 = vunpack.c.l.b16 %v1601
          %v1689 = vunpack.c.l.b16 %v1602
          %v1690 = vunpack.c.l.b16 %v1603
          %v1691 = vunpack.c.l.b16 %v1604
          %v1692 = vunpack.c.l.b16 %v1605
          %v1693 = vunpack.c.l.b16 %v1606
          %v1694 = vunpack.c.l.b16 %v1607
          %v1695 = vunpack.c.l.b16 %v1608
          %v1696 = vunpack.c.l.b16 %v1609
          %v1697 = vunpack.c.l.b16 %v1610
          %v1698 = vunpack.c.l.b16 %v1611
          %v1699 = vpack.c.b16 %v1668, %v1667
          %v1700 = vpack.c.b16 %v1670, %v1669
          %v1701 = vpack.c.b16 %v1672, %v1671
          %v1702 = vpack.c.b16 %v1674, %v1673
          %v1703 = vpack.c.b16 %v1676, %v1675
          %v1704 = vpack.c.b16 %v1678, %v1677
          %v1705 = vpack.c.b16 %v1680, %v1679
          %v1706 = vpack.c.b16 %v1682, %v1681
          %v1707 = vpack.c.b16 %v1684, %v1683
          %v1708 = vpack.c.b16 %v1686, %v1685
          %v1709 = vpack.c.b16 %v1688, %v1687
          %v1710 = vpack.c.b16 %v1690, %v1689
          %v1711 = vpack.c.b16 %v1692, %v1691
          %v1712 = vpack.c.b16 %v1694, %v1693
          %v1713 = vpack.c.b16 %v1696, %v1695
          %v1714 = vpack.c.b16 %v1698, %v1697
          %v1747 = vunpack.c.l.b16 %v1612
          %v1748 = vunpack.c.l.b16 %v1613
          %v1749 = vunpack.c.l.b16 %v1614
          %v1750 = vunpack.c.l.b16 %v1615
          %v1751 = vunpack.c.l.b16 %v1616
          %v1752 = vunpack.c.l.b16 %v1617
          %v1753 = vunpack.c.l.b16 %v1618
          %v1754 = vunpack.c.l.b16 %v1619
          %v1755 = vunpack.c.l.b16 %v1620
          %v1756 = vunpack.c.l.b16 %v1621
          %v1757 = vunpack.c.l.b16 %v1622
          %v1758 = vunpack.c.l.b16 %v1623
          %v1759 = vunpack.c.l.b16 %v1624
          %v1760 = vunpack.c.l.b16 %v1625
          %v1761 = vunpack.c.l.b16 %v1626
          %v1762 = vunpack.c.l.b16 %v1627
          %v1763 = vpack.c.b16 %v1748, %v1747
          %v1764 = vpack.c.b16 %v1750, %v1749
          %v1765 = vpack.c.b16 %v1752, %v1751
          %v1766 = vpack.c.b16 %v1754, %v1753
          %v1767 = vpack.c.b16 %v1756, %v1755
          %v1768 = vpack.c.b16 %v1758, %v1757
          %v1769 = vpack.c.b16 %v1760, %v1759
          %v1770 = vpack.c.b16 %v1762, %v1761
          %1779 = vmatprep.subr.bf16.mxu0 0
          %1780 = vmatpush1.bf16.msra.mxu0 %v1763
          %1781 = vmatprep.subr.bf16.mxu0 0
          %1782 = vmatpush1.bf16.msra.mxu0 %v1764
          %1783 = vmatprep.subr.bf16.mxu0 0
          %1784 = vmatpush1.bf16.msra.mxu0 %v1765
          %1785 = vmatprep.subr.bf16.mxu0 0
          %1786 = vmatpush1.bf16.msra.mxu0 %v1766
          %1787 = vmatprep.subr.bf16.mxu0 0
          %1788 = vmatpush1.bf16.msra.mxu0 %v1767
          %1789 = vmatprep.subr.bf16.mxu0 0
          %1790 = vmatpush1.bf16.msra.mxu0 %v1768
          %1791 = vmatprep.subr.bf16.mxu0 0
          %1792 = vmatpush1.bf16.msra.mxu0 %v1769
          %1793 = vmatprep.subr.bf16.mxu0 0
          %1794 = vmatpush1.bf16.msra.mxu0 %v1770
          %1795 = vmatprep.subr.bf16.mxu0 0
          %1796 = vmatpush1.bf16.msra.mxu0 0
          %1797 = vmatprep.subr.bf16.mxu0 0
          %1798 = vmatpush1.bf16.msra.mxu0 0
          %1799 = vmatprep.subr.bf16.mxu0 0
          %1800 = vmatpush1.bf16.msra.mxu0 0
          %1801 = vmatprep.subr.bf16.mxu0 0
          %1802 = vmatpush1.bf16.msra.mxu0 0
          %1803 = vmatprep.subr.bf16.mxu0 0
          %1804 = vmatpush1.bf16.msra.mxu0 0
          %1805 = vmatprep.subr.bf16.mxu0 0
          %1806 = vmatpush1.bf16.msra.mxu0 0
          %1807 = vmatprep.subr.bf16.mxu0 0
          %1808 = vmatpush1.bf16.msra.mxu0 0
          %1809 = vmatprep.subr.bf16.mxu0 0
          %1810 = vmatpush1.bf16.msra.mxu0 0
          %1811 = vmatprep.mubr.bf16.mxu0 0
          %1812 = vmatmul.mubr.bf16.gmra.mrb[0].mxu0 %v1699
          %v1813 = vpop.f32.mrb[0].mxu0
          %v1814 = vadd.f32 %v1633, %v1813
          %v1815 = vpop.f32.mrb[0].mxu0
          %v1816 = vpop.f32.mrb[0].mxu0
          %v1817 = vadd.f32 %v1633, %v1816
          %v1818 = vpop.f32.mrb[0].mxu0
          %1819 = vmatprep.mubr.bf16.mxu0 0
          %1820 = vmatmul.mubr.bf16.gmra.mrb[0].mxu0 %v1700
          %v1821 = vpop.f32.mrb[0].mxu0
          %v1822 = vadd.f32 %v1633, %v1821
          %v1823 = vpop.f32.mrb[0].mxu0
          %v1824 = vpop.f32.mrb[0].mxu0
          %v1825 = vadd.f32 %v1633, %v1824
          %v1826 = vpop.f32.mrb[0].mxu0
          %1827 = vmatprep.mubr.bf16.mxu0 0
          %1828 = vmatmul.mubr.bf16.gmra.mrb[0].mxu0 %v1701
          %v1829 = vpop.f32.mrb[0].mxu0
          %v1830 = vadd.f32 %v1633, %v1829
          %v1831 = vpop.f32.mrb[0].mxu0
          %v1832 = vpop.f32.mrb[0].mxu0
          %v1833 = vadd.f32 %v1633, %v1832
          %v1834 = vpop.f32.mrb[0].mxu0
          %1835 = vmatprep.mubr.bf16.mxu0 0
          %1836 = vmatmul.mubr.bf16.gmra.mrb[0].mxu0 %v1702
          %v1837 = vpop.f32.mrb[0].mxu0
          %v1838 = vadd.f32 %v1633, %v1837
          %v1839 = vpop.f32.mrb[0].mxu0
          %v1840 = vpop.f32.mrb[0].mxu0
          %v1841 = vadd.f32 %v1633, %v1840
          %v1842 = vpop.f32.mrb[0].mxu0
          %1843 = vmatprep.mubr.bf16.mxu0 0
          %1844 = vmatmul.mubr.bf16.gmra.mrb[0].mxu0 %v1703
          %v1845 = vpop.f32.mrb[0].mxu0
          %v1846 = vadd.f32 %v1633, %v1845
          %v1847 = vpop.f32.mrb[0].mxu0
          %v1848 = vpop.f32.mrb[0].mxu0
          %v1849 = vadd.f32 %v1633, %v1848
          %v1850 = vpop.f32.mrb[0].mxu0
          %1851 = vmatprep.mubr.bf16.mxu0 0
          %1852 = vmatmul.mubr.bf16.gmra.mrb[0].mxu0 %v1704
          %v1853 = vpop.f32.mrb[0].mxu0
          %v1854 = vadd.f32 %v1633, %v1853
          %v1855 = vpop.f32.mrb[0].mxu0
          %v1856 = vpop.f32.mrb[0].mxu0
          %v1857 = vadd.f32 %v1633, %v1856
          %v1858 = vpop.f32.mrb[0].mxu0
          %1859 = vmatprep.mubr.bf16.mxu0 0
          %1860 = vmatmul.mubr.bf16.gmra.mrb[0].mxu0 %v1705
          %v1861 = vpop.f32.mrb[0].mxu0
          %v1862 = vadd.f32 %v1633, %v1861
          %v1863 = vpop.f32.mrb[0].mxu0
          %v1864 = vpop.f32.mrb[0].mxu0
          %v1865 = vadd.f32 %v1633, %v1864
          %v1866 = vpop.f32.mrb[0].mxu0
          %1867 = vmatprep.mubr.bf16.mxu0 0
          %1868 = vmatmul.mubr.bf16.gmra.mrb[0].mxu0 %v1706
          %v1869 = vpop.f32.mrb[0].mxu0
          %v1870 = vadd.f32 %v1633, %v1869
          %v1871 = vpop.f32.mrb[0].mxu0
          %v1872 = vpop.f32.mrb[0].mxu0
          %v1873 = vadd.f32 %v1633, %v1872
          %v1874 = vpop.f32.mrb[0].mxu0
          %1875 = vmatprep.mubr.bf16.mxu0 0
          %1876 = vmatmul.mubr.bf16.gmra.mrb[0].mxu0 %v1707
          %v1877 = vpop.f32.mrb[0].mxu0
          %v1878 = vadd.f32 %v1633, %v1877
          %v1879 = vpop.f32.mrb[0].mxu0
          %v1880 = vpop.f32.mrb[0].mxu0
          %v1881 = vadd.f32 %v1633, %v1880
          %v1882 = vpop.f32.mrb[0].mxu0
          %1883 = vmatprep.mubr.bf16.mxu0 0
          %1884 = vmatmul.mubr.bf16.gmra.mrb[0].mxu0 %v1708
          %v1885 = vpop.f32.mrb[0].mxu0
          %v1886 = vadd.f32 %v1633, %v1885
          %v1887 = vpop.f32.mrb[0].mxu0
          %v1888 = vpop.f32.mrb[0].mxu0
          %v1889 = vadd.f32 %v1633, %v1888
          %v1890 = vpop.f32.mrb[0].mxu0
          %1891 = vmatprep.mubr.bf16.mxu0 0
          %1892 = vmatmul.mubr.bf16.gmra.mrb[0].mxu0 %v1709
          %v1893 = vpop.f32.mrb[0].mxu0
          %v1894 = vadd.f32 %v1633, %v1893
          %v1895 = vpop.f32.mrb[0].mxu0
          %v1896 = vpop.f32.mrb[0].mxu0
          %v1897 = vadd.f32 %v1633, %v1896
          %v1898 = vpop.f32.mrb[0].mxu0
          %1899 = vmatprep.mubr.bf16.mxu0 0
          %1900 = vmatmul.mubr.bf16.gmra.mrb[0].mxu0 %v1710
          %v1901 = vpop.f32.mrb[0].mxu0
          %v1902 = vadd.f32 %v1633, %v1901
          %v1903 = vpop.f32.mrb[0].mxu0
          %v1904 = vpop.f32.mrb[0].mxu0
          %v1905 = vadd.f32 %v1633, %v1904
          %v1906 = vpop.f32.mrb[0].mxu0
          %1907 = vmatprep.mubr.bf16.mxu0 0
          %1908 = vmatmul.mubr.bf16.gmra.mrb[0].mxu0 %v1711
          %v1909 = vpop.f32.mrb[0].mxu0
          %v1910 = vadd.f32 %v1633, %v1909
          %v1911 = vpop.f32.mrb[0].mxu0
          %v1912 = vpop.f32.mrb[0].mxu0
          %v1913 = vadd.f32 %v1633, %v1912
          %v1914 = vpop.f32.mrb[0].mxu0
          %1915 = vmatprep.mubr.bf16.mxu0 0
          %1916 = vmatmul.mubr.bf16.gmra.mrb[0].mxu0 %v1712
          %v1917 = vpop.f32.mrb[0].mxu0
          %v1918 = vadd.f32 %v1633, %v1917
          %v1919 = vpop.f32.mrb[0].mxu0
          %v1920 = vpop.f32.mrb[0].mxu0
          %v1921 = vadd.f32 %v1633, %v1920
          %v1922 = vpop.f32.mrb[0].mxu0
          %1923 = vmatprep.mubr.bf16.mxu0 0
          %1924 = vmatmul.mubr.bf16.gmra.mrb[0].mxu0 %v1713
          %v1925 = vpop.f32.mrb[0].mxu0
          %v1926 = vadd.f32 %v1633, %v1925
          %v1927 = vpop.f32.mrb[0].mxu0
          %v1928 = vpop.f32.mrb[0].mxu0
          %v1929 = vadd.f32 %v1633, %v1928
          %v1930 = vpop.f32.mrb[0].mxu0
          %1931 = vmatprep.mubr.bf16.mxu0 0
          %1932 = vmatmul.mubr.bf16.gmra.mrb[0].mxu0 %v1714
          %v1933 = vpop.f32.mrb[0].mxu0
          %v1934 = vadd.f32 %v1633, %v1933
          %v1935 = vpop.f32.mrb[0].mxu0
          %v1936 = vpop.f32.mrb[0].mxu0
          %v1937 = vadd.f32 %v1633, %v1936
          %v1938 = vpop.f32.mrb[0].mxu0
          %1939 = vdwg.mxu0
          %v1940 = vld [vmem:[#allocation2] sm:$0xff]
          %v1941 = vld [vmem:[#allocation2 + $0x8] sm:$0xff]
          %v1942 = vld [vmem:[#allocation2 + $0x10] sm:$0xff]
          %v1943 = vld [vmem:[#allocation2 + $0x18] sm:$0xff]
          %v1944 = vld [vmem:[#allocation2 + $0x20] sm:$0xff]
          %v1945 = vld [vmem:[#allocation2 + $0x28] sm:$0xff]
          %v1946 = vld [vmem:[#allocation2 + $0x30] sm:$0xff]
          %v1947 = vld [vmem:[#allocation2 + $0x38] sm:$0xff]
          %v1948 = vld [vmem:[#allocation2 + $0x40] sm:$0xff]
          %v1949 = vld [vmem:[#allocation2 + $0x48] sm:$0xff]
          %v1950 = vld [vmem:[#allocation2 + $0x50] sm:$0xff]
          %v1951 = vld [vmem:[#allocation2 + $0x58] sm:$0xff]
          %v1952 = vld [vmem:[#allocation2 + $0x60] sm:$0xff]
          %v1953 = vld [vmem:[#allocation2 + $0x68] sm:$0xff]
          %v1954 = vld [vmem:[#allocation2 + $0x70] sm:$0xff]
          %v1955 = vld [vmem:[#allocation2 + $0x78] sm:$0xff]
          %v1956 = vld [vmem:[#allocation2 + $0x80] sm:$0xff]
          %v1957 = vld [vmem:[#allocation2 + $0x88] sm:$0xff]
          %v1958 = vld [vmem:[#allocation2 + $0x90] sm:$0xff]
          %v1959 = vld [vmem:[#allocation2 + $0x98] sm:$0xff]
          %v1960 = vld [vmem:[#allocation2 + $0xa0] sm:$0xff]
          %v1961 = vld [vmem:[#allocation2 + $0xa8] sm:$0xff]
          %v1962 = vld [vmem:[#allocation2 + $0xb0] sm:$0xff]
          %v1963 = vld [vmem:[#allocation2 + $0xb8] sm:$0xff]
          %v1964 = vld [vmem:[#allocation2 + $0xc0] sm:$0xff]
          %v1965 = vld [vmem:[#allocation2 + $0xc8] sm:$0xff]
          %v1966 = vld [vmem:[#allocation2 + $0xd0] sm:$0xff]
          %v1967 = vld [vmem:[#allocation2 + $0xd8] sm:$0xff]
          %v1968 = vld [vmem:[#allocation2 + $0xe0] sm:$0xff]
          %v1969 = vld [vmem:[#allocation2 + $0xe8] sm:$0xff]
          %v1970 = vld [vmem:[#allocation2 + $0xf0] sm:$0xff]
          %v1971 = vld [vmem:[#allocation2 + $0xf8] sm:$0xff]
          %v1972 = vld [vmem:[%s382] sm:$0xff]
          %v1973 = vld [vmem:[%s382 + $0x8] sm:$0xff]
          %v1974 = vld [vmem:[%s382 + $0x10] sm:$0xff]
          %v1975 = vld [vmem:[%s382 + $0x18] sm:$0xff]
          %v1976 = vld [vmem:[%s382 + $0x20] sm:$0xff]
          %v1977 = vld [vmem:[%s382 + $0x28] sm:$0xff]
          %v1978 = vld [vmem:[%s382 + $0x30] sm:$0xff]
          %v1979 = vld [vmem:[%s382 + $0x38] sm:$0xff]
          %v1980 = vld [vmem:[%s382 + $0x40] sm:$0xff]
          %v1981 = vld [vmem:[%s382 + $0x48] sm:$0xff]
          %v1982 = vld [vmem:[%s382 + $0x50] sm:$0xff]
          %v1983 = vld [vmem:[%s382 + $0x58] sm:$0xff]
          %v1984 = vld [vmem:[%s382 + $0x60] sm:$0xff]
          %v1985 = vld [vmem:[%s382 + $0x68] sm:$0xff]
          %v1986 = vld [vmem:[%s382 + $0x70] sm:$0xff]
          %v1987 = vld [vmem:[%s382 + $0x78] sm:$0xff]
          %v1988 = vld [vmem:[%s382 + $0x80] sm:$0xff]
          %v1989 = vld [vmem:[%s382 + $0x88] sm:$0xff]
          %v1990 = vld [vmem:[%s382 + $0x90] sm:$0xff]
          %v1991 = vld [vmem:[%s382 + $0x98] sm:$0xff]
          %v1992 = vld [vmem:[%s382 + $0xa0] sm:$0xff]
          %v1993 = vld [vmem:[%s382 + $0xa8] sm:$0xff]
          %v1994 = vld [vmem:[%s382 + $0xb0] sm:$0xff]
          %v1995 = vld [vmem:[%s382 + $0xb8] sm:$0xff]
          %v1996 = vld [vmem:[%s382 + $0xc0] sm:$0xff]
          %v1997 = vld [vmem:[%s382 + $0xc8] sm:$0xff]
          %v1998 = vld [vmem:[%s382 + $0xd0] sm:$0xff]
          %v1999 = vld [vmem:[%s382 + $0xd8] sm:$0xff]
          %v2000 = vld [vmem:[%s382 + $0xe0] sm:$0xff]
          %v2001 = vld [vmem:[%s382 + $0xe8] sm:$0xff]
          %v2002 = vld [vmem:[%s382 + $0xf0] sm:$0xff]
          %v2003 = vld [vmem:[%s382 + $0xf8] sm:$0xff]
          %2005 = vset.pattern.permute.xlu0 0
          %2006 = vperm.xlu0 %2005, %v1972
          %v2007 = vpop.permute.xlu0 %2006
          %2010 = vset.pattern.permute.xlu0 0
          %2011 = vperm.xlu0 %2010, %v1973
          %v2012 = vpop.permute.xlu0 %2011
          %2015 = vset.pattern.permute.xlu0 0
          %2016 = vperm.xlu0 %2015, %v1974
          %v2017 = vpop.permute.xlu0 %2016
          %2020 = vset.pattern.permute.xlu0 0
          %2021 = vperm.xlu0 %2020, %v1975
          %v2022 = vpop.permute.xlu0 %2021
          %2025 = vset.pattern.permute.xlu0 0
          %2026 = vperm.xlu0 %2025, %v1976
          %v2027 = vpop.permute.xlu0 %2026
          %2030 = vset.pattern.permute.xlu0 0
          %2031 = vperm.xlu0 %2030, %v1977
          %v2032 = vpop.permute.xlu0 %2031
          %2035 = vset.pattern.permute.xlu0 0
          %2036 = vperm.xlu0 %2035, %v1978
          %v2037 = vpop.permute.xlu0 %2036
          %2040 = vset.pattern.permute.xlu0 0
          %2041 = vperm.xlu0 %2040, %v1979
          %v2042 = vpop.permute.xlu0 %2041
          %2045 = vset.pattern.permute.xlu0 0
          %2046 = vperm.xlu0 %2045, %v1980
          %v2047 = vpop.permute.xlu0 %2046
          %2050 = vset.pattern.permute.xlu0 0
          %2051 = vperm.xlu0 %2050, %v1981
          %v2052 = vpop.permute.xlu0 %2051
          %2055 = vset.pattern.permute.xlu0 0
          %2056 = vperm.xlu0 %2055, %v1982
          %v2057 = vpop.permute.xlu0 %2056
          %2060 = vset.pattern.permute.xlu0 0
          %2061 = vperm.xlu0 %2060, %v1983
          %v2062 = vpop.permute.xlu0 %2061
          %2065 = vset.pattern.permute.xlu0 0
          %2066 = vperm.xlu0 %2065, %v1984
          %v2067 = vpop.permute.xlu0 %2066
          %2070 = vset.pattern.permute.xlu0 0
          %2071 = vperm.xlu0 %2070, %v1985
          %v2072 = vpop.permute.xlu0 %2071
          %2075 = vset.pattern.permute.xlu0 0
          %2076 = vperm.xlu0 %2075, %v1986
          %v2077 = vpop.permute.xlu0 %2076
          %2080 = vset.pattern.permute.xlu0 0
          %2081 = vperm.xlu0 %2080, %v1987
          %v2082 = vpop.permute.xlu0 %2081
          %2085 = vset.pattern.permute.xlu0 0
          %2086 = vperm.xlu0 %2085, %v1988
          %v2087 = vpop.permute.xlu0 %2086
          %2090 = vset.pattern.permute.xlu0 0
          %2091 = vperm.xlu0 %2090, %v1989
          %v2092 = vpop.permute.xlu0 %2091
          %2095 = vset.pattern.permute.xlu0 0
          %2096 = vperm.xlu0 %2095, %v1990
          %v2097 = vpop.permute.xlu0 %2096
          %2100 = vset.pattern.permute.xlu0 0
          %2101 = vperm.xlu0 %2100, %v1991
          %v2102 = vpop.permute.xlu0 %2101
          %2105 = vset.pattern.permute.xlu0 0
          %2106 = vperm.xlu0 %2105, %v1992
          %v2107 = vpop.permute.xlu0 %2106
          %2110 = vset.pattern.permute.xlu0 0
          %2111 = vperm.xlu0 %2110, %v1993
          %v2112 = vpop.permute.xlu0 %2111
          %2115 = vset.pattern.permute.xlu0 0
          %2116 = vperm.xlu0 %2115, %v1994
          %v2117 = vpop.permute.xlu0 %2116
          %2120 = vset.pattern.permute.xlu0 0
          %2121 = vperm.xlu0 %2120, %v1995
          %v2122 = vpop.permute.xlu0 %2121
          %2125 = vset.pattern.permute.xlu0 0
          %2126 = vperm.xlu0 %2125, %v1996
          %v2127 = vpop.permute.xlu0 %2126
          %2130 = vset.pattern.permute.xlu0 0
          %2131 = vperm.xlu0 %2130, %v1997
          %v2132 = vpop.permute.xlu0 %2131
          %2135 = vset.pattern.permute.xlu0 0
          %2136 = vperm.xlu0 %2135, %v1998
          %v2137 = vpop.permute.xlu0 %2136
          %2140 = vset.pattern.permute.xlu0 0
          %2141 = vperm.xlu0 %2140, %v1999
          %v2142 = vpop.permute.xlu0 %2141
          %2145 = vset.pattern.permute.xlu0 0
          %2146 = vperm.xlu0 %2145, %v2000
          %v2147 = vpop.permute.xlu0 %2146
          %2150 = vset.pattern.permute.xlu0 0
          %2151 = vperm.xlu0 %2150, %v2001
          %v2152 = vpop.permute.xlu0 %2151
          %2155 = vset.pattern.permute.xlu0 0
          %2156 = vperm.xlu0 %2155, %v2002
          %v2157 = vpop.permute.xlu0 %2156
          %2160 = vset.pattern.permute.xlu0 0
          %2161 = vperm.xlu0 %2160, %v2003
          %v2162 = vpop.permute.xlu0 %2161
          %v2164 = vmul.f32 %v1940, %v2007
          %v2165 = vmul.f32 %v1941, %v2012
          %v2166 = vmul.f32 %v1942, %v2017
          %v2167 = vmul.f32 %v1943, %v2022
          %v2168 = vmul.f32 %v1944, %v2027
          %v2169 = vmul.f32 %v1945, %v2032
          %v2170 = vmul.f32 %v1946, %v2037
          %v2171 = vmul.f32 %v1947, %v2042
          %v2172 = vmul.f32 %v1948, %v2047
          %v2173 = vmul.f32 %v1949, %v2052
          %v2174 = vmul.f32 %v1950, %v2057
          %v2175 = vmul.f32 %v1951, %v2062
          %v2176 = vmul.f32 %v1952, %v2067
          %v2177 = vmul.f32 %v1953, %v2072
          %v2178 = vmul.f32 %v1954, %v2077
          %v2179 = vmul.f32 %v1955, %v2082
          %v2180 = vmul.f32 %v1956, %v2087
          %v2181 = vmul.f32 %v1957, %v2092
          %v2182 = vmul.f32 %v1958, %v2097
          %v2183 = vmul.f32 %v1959, %v2102
          %v2184 = vmul.f32 %v1960, %v2107
          %v2185 = vmul.f32 %v1961, %v2112
          %v2186 = vmul.f32 %v1962, %v2117
          %v2187 = vmul.f32 %v1963, %v2122
          %v2188 = vmul.f32 %v1964, %v2127
          %v2189 = vmul.f32 %v1965, %v2132
          %v2190 = vmul.f32 %v1966, %v2137
          %v2191 = vmul.f32 %v1967, %v2142
          %v2192 = vmul.f32 %v1968, %v2147
          %v2193 = vmul.f32 %v1969, %v2152
          %v2194 = vmul.f32 %v1970, %v2157
          %v2195 = vmul.f32 %v1971, %v2162
          %v2196 = vadd.f32 %v2164, %v1814
          %v2197 = vadd.f32 %v2165, %v1817
          %v2198 = vadd.f32 %v2166, %v1822
          %v2199 = vadd.f32 %v2167, %v1825
          %v2200 = vadd.f32 %v2168, %v1830
          %v2201 = vadd.f32 %v2169, %v1833
          %v2202 = vadd.f32 %v2170, %v1838
          %v2203 = vadd.f32 %v2171, %v1841
          %v2204 = vadd.f32 %v2172, %v1846
          %v2205 = vadd.f32 %v2173, %v1849
          %v2206 = vadd.f32 %v2174, %v1854
          %v2207 = vadd.f32 %v2175, %v1857
          %v2208 = vadd.f32 %v2176, %v1862
          %v2209 = vadd.f32 %v2177, %v1865
          %v2210 = vadd.f32 %v2178, %v1870
          %v2211 = vadd.f32 %v2179, %v1873
          %v2212 = vadd.f32 %v2180, %v1878
          %v2213 = vadd.f32 %v2181, %v1881
          %v2214 = vadd.f32 %v2182, %v1886
          %v2215 = vadd.f32 %v2183, %v1889
          %v2216 = vadd.f32 %v2184, %v1894
          %v2217 = vadd.f32 %v2185, %v1897
          %v2218 = vadd.f32 %v2186, %v1902
          %v2219 = vadd.f32 %v2187, %v1905
          %v2220 = vadd.f32 %v2188, %v1910
          %v2221 = vadd.f32 %v2189, %v1913
          %v2222 = vadd.f32 %v2190, %v1918
          %v2223 = vadd.f32 %v2191, %v1921
          %v2224 = vadd.f32 %v2192, %v1926
          %v2225 = vadd.f32 %v2193, %v1929
          %v2226 = vadd.f32 %v2194, %v1934
          %v2227 = vadd.f32 %v2195, %v1937
          %v2228 = vmax.f32 %v2196, 0.0
          %v2229 = vmax.f32 %v2197, 0.0
          %v2230 = vmax.f32 %v2198, 0.0
          %v2231 = vmax.f32 %v2199, 0.0
          %v2232 = vmax.f32 %v2200, 0.0
          %v2233 = vmax.f32 %v2201, 0.0
          %v2234 = vmax.f32 %v2202, 0.0
          %v2235 = vmax.f32 %v2203, 0.0
          %v2236 = vmax.f32 %v2204, 0.0
          %v2237 = vmax.f32 %v2205, 0.0
          %v2238 = vmax.f32 %v2206, 0.0
          %v2239 = vmax.f32 %v2207, 0.0
          %v2240 = vmax.f32 %v2208, 0.0
          %v2241 = vmax.f32 %v2209, 0.0
          %v2242 = vmax.f32 %v2210, 0.0
          %v2243 = vmax.f32 %v2211, 0.0
          %v2244 = vmax.f32 %v2212, 0.0
          %v2245 = vmax.f32 %v2213, 0.0
          %v2246 = vmax.f32 %v2214, 0.0
          %v2247 = vmax.f32 %v2215, 0.0
          %v2248 = vmax.f32 %v2216, 0.0
          %v2249 = vmax.f32 %v2217, 0.0
          %v2250 = vmax.f32 %v2218, 0.0
          %v2251 = vmax.f32 %v2219, 0.0
          %v2252 = vmax.f32 %v2220, 0.0
          %v2253 = vmax.f32 %v2221, 0.0
          %v2254 = vmax.f32 %v2222, 0.0
          %v2255 = vmax.f32 %v2223, 0.0
          %v2256 = vmax.f32 %v2224, 0.0
          %v2257 = vmax.f32 %v2225, 0.0
          %v2258 = vmax.f32 %v2226, 0.0
          %v2259 = vmax.f32 %v2227, 0.0
          %v2260 = vpack.c.bf16 %v2229, %v2228
          %v2261 = vpack.c.bf16 %v2231, %v2230
          %v2262 = vpack.c.bf16 %v2233, %v2232
          %v2263 = vpack.c.bf16 %v2235, %v2234
          %v2264 = vpack.c.bf16 %v2237, %v2236
          %v2265 = vpack.c.bf16 %v2239, %v2238
          %v2266 = vpack.c.bf16 %v2241, %v2240
          %v2267 = vpack.c.bf16 %v2243, %v2242
          %v2268 = vpack.c.bf16 %v2245, %v2244
          %v2269 = vpack.c.bf16 %v2247, %v2246
          %v2270 = vpack.c.bf16 %v2249, %v2248
          %v2271 = vpack.c.bf16 %v2251, %v2250
          %v2272 = vpack.c.bf16 %v2253, %v2252
          %v2273 = vpack.c.bf16 %v2255, %v2254
          %v2274 = vpack.c.bf16 %v2257, %v2256
          %v2275 = vpack.c.bf16 %v2259, %v2258
          %v2292 = vunpack.c.l.b16 %v2260
          %v2293 = vunpack.c.h.b16 %v2260
          %v2294 = vunpack.c.l.b16 %v2261
          %v2295 = vunpack.c.h.b16 %v2261
          %v2296 = vunpack.c.l.b16 %v2262
          %v2297 = vunpack.c.h.b16 %v2262
          %v2298 = vunpack.c.l.b16 %v2263
          %v2299 = vunpack.c.h.b16 %v2263
          %v2300 = vunpack.c.l.b16 %v2264
          %v2301 = vunpack.c.h.b16 %v2264
          %v2302 = vunpack.c.l.b16 %v2265
          %v2303 = vunpack.c.h.b16 %v2265
          %v2304 = vunpack.c.l.b16 %v2266
          %v2305 = vunpack.c.h.b16 %v2266
          %v2306 = vunpack.c.l.b16 %v2267
          %v2307 = vunpack.c.h.b16 %v2267
          %v2308 = vunpack.c.l.b16 %v2268
          %v2309 = vunpack.c.h.b16 %v2268
          %v2310 = vunpack.c.l.b16 %v2269
          %v2311 = vunpack.c.h.b16 %v2269
          %v2312 = vunpack.c.l.b16 %v2270
          %v2313 = vunpack.c.h.b16 %v2270
          %v2314 = vunpack.c.l.b16 %v2271
          %v2315 = vunpack.c.h.b16 %v2271
          %v2316 = vunpack.c.l.b16 %v2272
          %v2317 = vunpack.c.h.b16 %v2272
          %v2318 = vunpack.c.l.b16 %v2273
          %v2319 = vunpack.c.h.b16 %v2273
          %v2320 = vunpack.c.l.b16 %v2274
          %v2321 = vunpack.c.h.b16 %v2274
          %v2322 = vunpack.c.l.b16 %v2275
          %v2323 = vunpack.c.h.b16 %v2275
          %v2324 = vpack.c.b16 %v2292, %v2292
          %v2325 = vpack.c.b16 %v2293, %v2293
          %v2326 = vpack.c.b16 %v2294, %v2294
          %v2327 = vpack.c.b16 %v2295, %v2295
          %v2328 = vpack.c.b16 %v2296, %v2296
          %v2329 = vpack.c.b16 %v2297, %v2297
          %v2330 = vpack.c.b16 %v2298, %v2298
          %v2331 = vpack.c.b16 %v2299, %v2299
          %v2332 = vpack.c.b16 %v2300, %v2300
          %v2333 = vpack.c.b16 %v2301, %v2301
          %v2334 = vpack.c.b16 %v2302, %v2302
          %v2335 = vpack.c.b16 %v2303, %v2303
          %v2336 = vpack.c.b16 %v2304, %v2304
          %v2337 = vpack.c.b16 %v2305, %v2305
          %v2338 = vpack.c.b16 %v2306, %v2306
          %v2339 = vpack.c.b16 %v2307, %v2307
          %v2340 = vpack.c.b16 %v2308, %v2308
          %v2341 = vpack.c.b16 %v2309, %v2309
          %v2342 = vpack.c.b16 %v2310, %v2310
          %v2343 = vpack.c.b16 %v2311, %v2311
          %v2344 = vpack.c.b16 %v2312, %v2312
          %v2345 = vpack.c.b16 %v2313, %v2313
          %v2346 = vpack.c.b16 %v2314, %v2314
          %v2347 = vpack.c.b16 %v2315, %v2315
          %v2348 = vpack.c.b16 %v2316, %v2316
          %v2349 = vpack.c.b16 %v2317, %v2317
          %v2350 = vpack.c.b16 %v2318, %v2318
          %v2351 = vpack.c.b16 %v2319, %v2319
          %v2352 = vpack.c.b16 %v2320, %v2320
          %v2353 = vpack.c.b16 %v2321, %v2321
          %v2354 = vpack.c.b16 %v2322, %v2322
          %v2355 = vpack.c.b16 %v2323, %v2323
          %2388 = vst [vmem:[%s363] sm:$0xf] %v2324
          %2389 = vst [vmem:[%s363 + $0x4] sm:$0xf] %v2325
          %2390 = vst [vmem:[%s363 + $0x8] sm:$0xf] %v2326
          %2391 = vst [vmem:[%s363 + $0xc] sm:$0xf] %v2327
          %2392 = vst [vmem:[%s363 + $0x10] sm:$0xf] %v2328
          %2393 = vst [vmem:[%s363 + $0x14] sm:$0xf] %v2329
          %2394 = vst [vmem:[%s363 + $0x18] sm:$0xf] %v2330
          %2395 = vst [vmem:[%s363 + $0x1c] sm:$0xf] %v2331
          %2396 = vst [vmem:[%s363 + $0x20] sm:$0xf] %v2332
          %2397 = vst [vmem:[%s363 + $0x24] sm:$0xf] %v2333
          %2398 = vst [vmem:[%s363 + $0x28] sm:$0xf] %v2334
          %2399 = vst [vmem:[%s363 + $0x2c] sm:$0xf] %v2335
          %2400 = vst [vmem:[%s363 + $0x30] sm:$0xf] %v2336
          %2401 = vst [vmem:[%s363 + $0x34] sm:$0xf] %v2337
          %2402 = vst [vmem:[%s363 + $0x38] sm:$0xf] %v2338
          %2403 = vst [vmem:[%s363 + $0x3c] sm:$0xf] %v2339
          %2404 = vst [vmem:[%s363 + $0x40] sm:$0xf] %v2340
          %2405 = vst [vmem:[%s363 + $0x44] sm:$0xf] %v2341
          %2406 = vst [vmem:[%s363 + $0x48] sm:$0xf] %v2342
          %2407 = vst [vmem:[%s363 + $0x4c] sm:$0xf] %v2343
          %2408 = vst [vmem:[%s363 + $0x50] sm:$0xf] %v2344
          %2409 = vst [vmem:[%s363 + $0x54] sm:$0xf] %v2345
          %2410 = vst [vmem:[%s363 + $0x58] sm:$0xf] %v2346
          %2411 = vst [vmem:[%s363 + $0x5c] sm:$0xf] %v2347
          %2412 = vst [vmem:[%s363 + $0x60] sm:$0xf] %v2348
          %2413 = vst [vmem:[%s363 + $0x64] sm:$0xf] %v2349
          %2414 = vst [vmem:[%s363 + $0x68] sm:$0xf] %v2350
          %2415 = vst [vmem:[%s363 + $0x6c] sm:$0xf] %v2351
          %2416 = vst [vmem:[%s363 + $0x70] sm:$0xf] %v2352
          %2417 = vst [vmem:[%s363 + $0x74] sm:$0xf] %v2353
          %2418 = vst [vmem:[%s363 + $0x78] sm:$0xf] %v2354
          %2419 = vst [vmem:[%s363 + $0x7c] sm:$0xf] %v2355
        $region64: #{tpu_custom_call.1} parent=43 // pred_fallthru
          _
        %s2420 = sand.u32 %s192, 1
        %s2421 = scalar_lea.sflag [#allocation5], %s2420
        %s2422 = sand.u32 %s192, 1
        %s2423 = smul.addr %s2422, 128
        %s2424 = scalar_lea.vmem [#allocation9], %s2423
        // Predicated region
        $region65: #{tpu_custom_call.1} parent=43 // pred_check
          %p2425 = pneg %p202
        $region66: #{tpu_custom_call.1} parent=43 // pred_check_branch
          %2427 = sbr.rel (%p2425) target = $region68
        $region67: #{tpu_custom_call.1} parent=43 // pred_region
          %s2428 = smul.u32 32, %s28
          %s2430 = ssub.s32 2048, 2048
          %2431 = vsyncadd %s2421, %s2430
          %s2432 = smul.addr %s2428, 64
          %s2433 = scalar_lea.hbm %s6, %s2432
          %s2434 = sshll.u32 %s2424, 4
          %s2435 = int_to_ptr.vmem [resolvable:$true] %s2434
          %2440 = dma.vmem_to_hbm [thread:$0]  %s2435, 2048, %s2433, %s2421, 64, 64, 4
        $region68: #{tpu_custom_call.1} parent=43 // pred_fallthru
          _
      $region44: #{tpu_custom_call.1} parent=5 // pred_fallthru
        _
      %p2441 = scmp.le.s32.totalorder 2, %s19
      // Predicated region
      $region69: #{tpu_custom_call.1} parent=5 // pred_check
        %p2442 = pneg %p2441
      $region70: #{tpu_custom_call.1} parent=5 // pred_check_branch
        %2444 = sbr.rel (%p2442) target = $region72
      $region71: #{tpu_custom_call.1} parent=5 // pred_region
        %s2445 = ssub.s32 %s19, 2
        // Predicated region
        $region73: #{tpu_custom_call.1} parent=71 // pred_check
          %p2446 = pneg %p208
        $region74: #{tpu_custom_call.1} parent=71 // pred_check_branch
          %2448 = sbr.rel (%p2446) target = $region76
        $region75: #{tpu_custom_call.1} parent=71 // pred_region
          %s2449 = sand.u32 %s193, 1
          %s2450 = scalar_lea.sflag [#allocation5], %s2449
          %s2451 = sand.u32 %s193, 1
          %s2452 = smul.addr %s2451, 128
          %s2453 = scalar_lea.vmem [#allocation9], %s2452
          %2454 = dma.done %s2450, 2048
        $region76: #{tpu_custom_call.1} parent=71 // pred_fallthru
          _
      $region72: #{tpu_custom_call.1} parent=5 // pred_fallthru
        _
    $region6: #{tpu_custom_call.1} parent=1 // loop_footer
      %s23 = sadd.s32 1, %s19
    $region7: #{tpu_custom_call.1} parent=1 // loop_footer_branch
      %18 = sbr.rel target = $region3
    $region8: #{tpu_custom_call.1} parent=1 // loop_exit
      _
    %2455 = vsyncpa [#allocation4], 1
    %s2456 = scalar_lea.sflag [#allocation4], 1
    %2457 = vsyncpa %s2456, 1
    %2458 = vsyncpa [#allocation7], 1
    %s2459 = scalar_lea.sflag [#allocation7], 1
    %2460 = vsyncpa %s2459, 1
    %2461 = vsyncpa [#allocation5], 1
    %s2462 = scalar_lea.sflag [#allocation5], 1
    %2463 = vsyncpa %s2462, 1

</llo_original>
